<compile_context>
chip_gen: v5e
topology: v5e:2x2
jax: 0.10.0
libtpu: 0.0.40
codegen_flags: <defaults>
</compile_context>

<pallas_src>
import functools

import jax
import jax.numpy as jnp
from jax import lax
from jax.experimental import pallas as pl
from jax.experimental.pallas import tpu as pltpu


def residule_kernel(x_ref, w1_ref, b1_ref, w2_ref, b2_ref, m_ref, o_ref, *, W):
    # x_ref : (1, R, HW)   R = images_per_block * C rows (sublane-full tile)
    # w*_ref: (9, R, R)    per-tap block-diagonal (row_out, row_in) matrices
    # b*_ref: (R, 1)       per-row conv bias
    # m_ref : (9, 1, HW)   per-tap 0/1 boundary masks (implicit zero padding)
    # o_ref : (1, R, HW)
    x = x_ref[0]                                   # (R, HW)
    R, HW = x.shape

    # Tap k = (oy+1)*3 + (ox+1), matching the (kh, kw) order of the weights.
    offs = tuple(oy * W + ox for oy in (-1, 0, 1) for ox in (-1, 0, 1))

    def conv3x3(img, w_ref, b_ref):
        # Accumulator starts as the broadcast bias (saves a full-tile add).
        acc = jnp.broadcast_to(b_ref[...].astype(jnp.float32), (R, HW))
        for k, off in enumerate(offs):
            if off == 0:
                sh = img
            else:
                # shifted[p] = img[p + off]  (lane rotation on the XLU);
                # lanes that wrapped across the image boundary are zeroed by
                # the precomputed mask (sublane-broadcast multiply on the VPU).
                sh = pltpu.roll(img, (-off) % HW, axis=1)
                sh = sh * m_ref[k]                 # (1, HW) broadcast over rows
            # (R, R) @ (R, HW) on the MXU, f32 accumulation.
            acc = acc + lax.dot_general(
                w_ref[k], sh,
                dimension_numbers=(((1,), (0,)), ((), ())),
                preferred_element_type=jnp.float32)
        return jnp.maximum(acc, 0.0)

    h1 = conv3x3(x, w1_ref, b1_ref)                # conv1 + ReLU (stays in regs)
    h2 = conv3x3(h1, w2_ref, b2_ref)               # conv2 + ReLU
    o_ref[0] = (h2 + x.astype(h2.dtype)).astype(o_ref.dtype)   # residual add


def _block_diag_taps(w_oihw, ipb):
    """OIHW (C, C, 3, 3) -> (9, ipb*C, ipb*C) per-tap block-diagonal matrices."""
    C = w_oihw.shape[0]
    w_t = jnp.transpose(w_oihw, (2, 3, 0, 1)).reshape(9, C, C)   # (9, Cout, Cin)
    eye = jnp.eye(ipb, dtype=w_t.dtype)
    return jnp.einsum("nm,kij->knimj", eye, w_t).reshape(9, ipb * C, ipb * C)


def _boundary_masks(H, W, dtype):
    """(9, 1, H*W) 0/1 validity masks for the 3x3 taps (implicit zero pad)."""
    pos = jnp.arange(H * W, dtype=jnp.int32)
    yy, xx = pos // W, pos % W
    rows = []
    for oy in (-1, 0, 1):
        for ox in (-1, 0, 1):
            m = jnp.ones((H * W,), dtype=jnp.bool_)
            if oy < 0:
                m &= yy >= -oy
            elif oy > 0:
                m &= yy < H - oy
            if ox < 0:
                m &= xx >= -ox
            elif ox > 0:
                m &= xx < W - ox
            rows.append(m)
    # dtype-matched to the activations so no silent promotion if bf16 inputs
    # are ever introduced.
    return jnp.stack(rows).reshape(9, 1, H * W).astype(dtype)


def residule_forward(x_nchw, w1_oihw, b1, w2_oihw, b2):
    """Pallas implementation of Residule.forward. Input/output are NCHW."""
    N, C, H, W = x_nchw.shape
    HW = H * W

    # Pack images onto sublanes until a block has >= 8 rows (full vreg), while
    # keeping the packing factor a divisor of N.  N=2, C=4 -> ipb=2, R=8,
    # grid=(1,) : a single sublane/lane-full tile, one grid step.
    ipb = min(N, pl.cdiv(8, C))
    while N % ipb:
        ipb -= 1
    n_blocks = N // ipb
    R = ipb * C

    # Free reshape (contiguous collapse) — no NCHW<->NHWC transpose, no pad.
    x_blk = x_nchw.reshape(n_blocks, R, HW)

    w1_b = _block_diag_taps(w1_oihw.astype(jnp.float32), ipb)
    w2_b = _block_diag_taps(w2_oihw.astype(jnp.float32), ipb)
    b1_r = jnp.tile(b1.astype(jnp.float32), ipb).reshape(R, 1)
    b2_r = jnp.tile(b2.astype(jnp.float32), ipb).reshape(R, 1)
    masks = _boundary_masks(H, W, x_nchw.dtype)

    out_blk = pl.pallas_call(
        functools.partial(residule_kernel, W=W),
        out_shape=jax.ShapeDtypeStruct((n_blocks, R, HW), x_nchw.dtype),
        grid_spec=pltpu.PrefetchScalarGridSpec(
            num_scalar_prefetch=0,
            grid=(n_blocks,),
            in_specs=[
                pl.BlockSpec((1, R, HW), lambda n: (n, 0, 0)),
                pl.BlockSpec((9, R, R), lambda n: (0, 0, 0)),
                pl.BlockSpec((R, 1), lambda n: (0, 0)),
                pl.BlockSpec((9, R, R), lambda n: (0, 0, 0)),
                pl.BlockSpec((R, 1), lambda n: (0, 0)),
                pl.BlockSpec((9, 1, HW), lambda n: (0, 0, 0)),
            ],
            out_specs=pl.BlockSpec((1, R, HW), lambda n: (n, 0, 0)),
        ),
        compiler_params=pltpu.CompilerParams(
            dimension_semantics=(
                ("parallel",) if n_blocks > 1 else ("arbitrary",))),
    )(x_blk, w1_b, b1_r, w2_b, b2_r, masks)

    return out_blk.reshape(N, C, H, W)


def residule_reference(x, w1, b1, w2, b2):
    """Plain-JAX reference matching PyTorch semantics (NCHW / OIHW)."""
    dn = ("NCHW", "OIHW", "NCHW")
    y = lax.conv_general_dilated(x, w1, (1, 1), "SAME", dimension_numbers=dn)
    y = jax.nn.relu(y + b1.reshape(1, -1, 1, 1))
    y = lax.conv_general_dilated(y, w2, (1, 1), "SAME", dimension_numbers=dn)
    y = jax.nn.relu(y + b2.reshape(1, -1, 1, 1))
    return y + x


if __name__ == "__main__":
    # Small shapes: batch=2, channels=4, spatial=16  (NCHW, like the module)
    N, C, H, W = 2, 4, 16, 16
    key = jax.random.PRNGKey(0)
    kx, k1, k2, k3, k4 = jax.random.split(key, 5)

    x = jax.random.normal(kx, (N, C, H, W), dtype=jnp.float32)
    # Deterministic synthetic parameters (PyTorch Conv2d shapes: OIHW + bias)
    w1 = 0.1 * jax.random.normal(k1, (C, C, 3, 3), dtype=jnp.float32)
    b1 = 0.1 * jax.random.normal(k2, (C,), dtype=jnp.float32)
    w2 = 0.1 * jax.random.normal(k3, (C, C, 3, 3), dtype=jnp.float32)
    b2 = 0.1 * jax.random.normal(k4, (C,), dtype=jnp.float32)

    out = jax.block_until_ready(residule_forward(x, w1, b1, w2, b2))

    ref = residule_reference(x, w1, b1, w2, b2)
    assert out.shape == ref.shape == (N, C, H, W)
    err = jnp.max(jnp.abs(out - ref))
    assert jnp.allclose(out, ref, atol=1e-4, rtol=1e-4), f"max abs err = {err}"

    print("KERNEL_OK")
</pallas_src>

<mosaic_0001>
module attributes {stable_mosaic.version = 11 : i64} {
  func.func @residule_kernel(%arg0: i32, %arg1: memref<1x8x256xf32, #tpu.memory_space<vmem>>, %arg2: memref<9x8x8xf32, #tpu.memory_space<vmem>>, %arg3: memref<8x1xf32, #tpu.memory_space<vmem>>, %arg4: memref<9x8x8xf32, #tpu.memory_space<vmem>>, %arg5: memref<8x1xf32, #tpu.memory_space<vmem>>, %arg6: memref<9x1x256xf32, #tpu.memory_space<vmem>>, %arg7: memref<1x8x256xf32, #tpu.memory_space<vmem>>) attributes {dimension_semantics = [#tpu.dimension_semantics<arbitrary>], iteration_bounds = array<i64: 1>, scalar_prefetch = 0 : i64, scratch_operands = 0 : i64, tpu.core_type = #tpu.core_type<tc>, window_params = [{transform_indices = @transform_0, window_bounds = array<i64: 1, 8, 256>}, {pipeline_mode = #tpu.pipeline_mode<synchronous>, transform_indices = @transform_1, window_bounds = array<i64: 9, 8, 8>}, {pipeline_mode = #tpu.pipeline_mode<synchronous>, transform_indices = @transform_2, window_bounds = array<i64: 8, 1>}, {pipeline_mode = #tpu.pipeline_mode<synchronous>, transform_indices = @transform_3, window_bounds = array<i64: 9, 8, 8>}, {pipeline_mode = #tpu.pipeline_mode<synchronous>, transform_indices = @transform_4, window_bounds = array<i64: 8, 1>}, {pipeline_mode = #tpu.pipeline_mode<synchronous>, transform_indices = @transform_5, window_bounds = array<i64: 9, 1, 256>}, {transform_indices = @transform_6, window_bounds = array<i64: 1, 8, 256>}]} {
    %c0 = arith.constant 0 : index
    %c0_0 = arith.constant 0 : index
    %c0_1 = arith.constant 0 : index
    %0 = vector.load %arg1[%c0, %c0_0, %c0_1] : memref<1x8x256xf32, #tpu.memory_space<vmem>>, vector<1x8x256xf32>
    %1 = vector.shape_cast %0 : vector<1x8x256xf32> to vector<8x256xf32>
    %c0_2 = arith.constant 0 : index
    %c0_3 = arith.constant 0 : index
    %2 = vector.load %arg3[%c0_2, %c0_3] : memref<8x1xf32, #tpu.memory_space<vmem>>, vector<8x1xf32>
    %3 = vector.shape_cast %2 : vector<8x1xf32> to vector<8x1xf32>
    %4 = vector.broadcast %3 : vector<8x1xf32> to vector<8x256xf32>
    %c17_i32 = arith.constant 17 : i32
    %5 = tpu.dynamic_rotate %1 by %c17_i32 dim 1 : vector<8x256xf32>, i32 -> vector<8x256xf32>
    %c0_4 = arith.constant 0 : index
    %c0_5 = arith.constant 0 : index
    %c0_6 = arith.constant 0 : index
    %6 = vector.load %arg6[%c0_4, %c0_5, %c0_6] : memref<9x1x256xf32, #tpu.memory_space<vmem>>, vector<1x1x256xf32>
    %7 = vector.shape_cast %6 : vector<1x1x256xf32> to vector<1x256xf32>
    %8 = vector.broadcast %7 : vector<1x256xf32> to vector<8x256xf32>
    %9 = arith.mulf %5, %8 : vector<8x256xf32>
    %c0_7 = arith.constant 0 : index
    %c0_8 = arith.constant 0 : index
    %c0_9 = arith.constant 0 : index
    %10 = vector.load %arg2[%c0_7, %c0_8, %c0_9] : memref<9x8x8xf32, #tpu.memory_space<vmem>>, vector<1x8x8xf32>
    %11 = vector.shape_cast %10 : vector<1x8x8xf32> to vector<8x8xf32>
    %cst = arith.constant dense<0.000000e+00> : vector<8x256xf32>
    %12 = tpu.matmul %11, %9, %cst {dimension_numbers = #tpu.dot_dimension_numbers<[1], [0], [0], [1], [0, 0, 1, 1], [], []>} : vector<8x8xf32>, vector<8x256xf32>, vector<8x256xf32> -> vector<8x256xf32>
    %13 = arith.addf %4, %12 : vector<8x256xf32>
    %c16_i32 = arith.constant 16 : i32
    %14 = tpu.dynamic_rotate %1 by %c16_i32 dim 1 : vector<8x256xf32>, i32 -> vector<8x256xf32>
    %c1 = arith.constant 1 : index
    %c0_10 = arith.constant 0 : index
    %c0_11 = arith.constant 0 : index
    %15 = vector.load %arg6[%c1, %c0_10, %c0_11] : memref<9x1x256xf32, #tpu.memory_space<vmem>>, vector<1x1x256xf32>
    %16 = vector.shape_cast %15 : vector<1x1x256xf32> to vector<1x256xf32>
    %17 = vector.broadcast %16 : vector<1x256xf32> to vector<8x256xf32>
    %18 = arith.mulf %14, %17 : vector<8x256xf32>
    %c1_12 = arith.constant 1 : index
    %c0_13 = arith.constant 0 : index
    %c0_14 = arith.constant 0 : index
    %19 = vector.load %arg2[%c1_12, %c0_13, %c0_14] : memref<9x8x8xf32, #tpu.memory_space<vmem>>, vector<1x8x8xf32>
    %20 = vector.shape_cast %19 : vector<1x8x8xf32> to vector<8x8xf32>
    %cst_15 = arith.constant dense<0.000000e+00> : vector<8x256xf32>
    %21 = tpu.matmul %20, %18, %cst_15 {dimension_numbers = #tpu.dot_dimension_numbers<[1], [0], [0], [1], [0, 0, 1, 1], [], []>} : vector<8x8xf32>, vector<8x256xf32>, vector<8x256xf32> -> vector<8x256xf32>
    %22 = arith.addf %13, %21 : vector<8x256xf32>
    %c15_i32 = arith.constant 15 : i32
    %23 = tpu.dynamic_rotate %1 by %c15_i32 dim 1 : vector<8x256xf32>, i32 -> vector<8x256xf32>
    %c2 = arith.constant 2 : index
    %c0_16 = arith.constant 0 : index
    %c0_17 = arith.constant 0 : index
    %24 = vector.load %arg6[%c2, %c0_16, %c0_17] : memref<9x1x256xf32, #tpu.memory_space<vmem>>, vector<1x1x256xf32>
    %25 = vector.shape_cast %24 : vector<1x1x256xf32> to vector<1x256xf32>
    %26 = vector.broadcast %25 : vector<1x256xf32> to vector<8x256xf32>
    %27 = arith.mulf %23, %26 : vector<8x256xf32>
    %c2_18 = arith.constant 2 : index
    %c0_19 = arith.constant 0 : index
    %c0_20 = arith.constant 0 : index
    %28 = vector.load %arg2[%c2_18, %c0_19, %c0_20] : memref<9x8x8xf32, #tpu.memory_space<vmem>>, vector<1x8x8xf32>
    %29 = vector.shape_cast %28 : vector<1x8x8xf32> to vector<8x8xf32>
    %cst_21 = arith.constant dense<0.000000e+00> : vector<8x256xf32>
    %30 = tpu.matmul %29, %27, %cst_21 {dimension_numbers = #tpu.dot_dimension_numbers<[1], [0], [0], [1], [0, 0, 1, 1], [], []>} : vector<8x8xf32>, vector<8x256xf32>, vector<8x256xf32> -> vector<8x256xf32>
    %31 = arith.addf %22, %30 : vector<8x256xf32>
    %c1_i32 = arith.constant 1 : i32
    %32 = tpu.dynamic_rotate %1 by %c1_i32 dim 1 : vector<8x256xf32>, i32 -> vector<8x256xf32>
    %c3 = arith.constant 3 : index
    %c0_22 = arith.constant 0 : index
    %c0_23 = arith.constant 0 : index
    %33 = vector.load %arg6[%c3, %c0_22, %c0_23] : memref<9x1x256xf32, #tpu.memory_space<vmem>>, vector<1x1x256xf32>
    %34 = vector.shape_cast %33 : vector<1x1x256xf32> to vector<1x256xf32>
    %35 = vector.broadcast %34 : vector<1x256xf32> to vector<8x256xf32>
    %36 = arith.mulf %32, %35 : vector<8x256xf32>
    %c3_24 = arith.constant 3 : index
    %c0_25 = arith.constant 0 : index
    %c0_26 = arith.constant 0 : index
    %37 = vector.load %arg2[%c3_24, %c0_25, %c0_26] : memref<9x8x8xf32, #tpu.memory_space<vmem>>, vector<1x8x8xf32>
    %38 = vector.shape_cast %37 : vector<1x8x8xf32> to vector<8x8xf32>
    %cst_27 = arith.constant dense<0.000000e+00> : vector<8x256xf32>
    %39 = tpu.matmul %38, %36, %cst_27 {dimension_numbers = #tpu.dot_dimension_numbers<[1], [0], [0], [1], [0, 0, 1, 1], [], []>} : vector<8x8xf32>, vector<8x256xf32>, vector<8x256xf32> -> vector<8x256xf32>
    %40 = arith.addf %31, %39 : vector<8x256xf32>
    %c4 = arith.constant 4 : index
    %c0_28 = arith.constant 0 : index
    %c0_29 = arith.constant 0 : index
    %41 = vector.load %arg2[%c4, %c0_28, %c0_29] : memref<9x8x8xf32, #tpu.memory_space<vmem>>, vector<1x8x8xf32>
    %42 = vector.shape_cast %41 : vector<1x8x8xf32> to vector<8x8xf32>
    %cst_30 = arith.constant dense<0.000000e+00> : vector<8x256xf32>
    %43 = tpu.matmul %42, %1, %cst_30 {dimension_numbers = #tpu.dot_dimension_numbers<[1], [0], [0], [1], [0, 0, 1, 1], [], []>} : vector<8x8xf32>, vector<8x256xf32>, vector<8x256xf32> -> vector<8x256xf32>
    %44 = arith.addf %40, %43 : vector<8x256xf32>
    %c255_i32 = arith.constant 255 : i32
    %45 = tpu.dynamic_rotate %1 by %c255_i32 dim 1 : vector<8x256xf32>, i32 -> vector<8x256xf32>
    %c5 = arith.constant 5 : index
    %c0_31 = arith.constant 0 : index
    %c0_32 = arith.constant 0 : index
    %46 = vector.load %arg6[%c5, %c0_31, %c0_32] : memref<9x1x256xf32, #tpu.memory_space<vmem>>, vector<1x1x256xf32>
    %47 = vector.shape_cast %46 : vector<1x1x256xf32> to vector<1x256xf32>
    %48 = vector.broadcast %47 : vector<1x256xf32> to vector<8x256xf32>
    %49 = arith.mulf %45, %48 : vector<8x256xf32>
    %c5_33 = arith.constant 5 : index
    %c0_34 = arith.constant 0 : index
    %c0_35 = arith.constant 0 : index
    %50 = vector.load %arg2[%c5_33, %c0_34, %c0_35] : memref<9x8x8xf32, #tpu.memory_space<vmem>>, vector<1x8x8xf32>
    %51 = vector.shape_cast %50 : vector<1x8x8xf32> to vector<8x8xf32>
    %cst_36 = arith.constant dense<0.000000e+00> : vector<8x256xf32>
    %52 = tpu.matmul %51, %49, %cst_36 {dimension_numbers = #tpu.dot_dimension_numbers<[1], [0], [0], [1], [0, 0, 1, 1], [], []>} : vector<8x8xf32>, vector<8x256xf32>, vector<8x256xf32> -> vector<8x256xf32>
    %53 = arith.addf %44, %52 : vector<8x256xf32>
    %c241_i32 = arith.constant 241 : i32
    %54 = tpu.dynamic_rotate %1 by %c241_i32 dim 1 : vector<8x256xf32>, i32 -> vector<8x256xf32>
    %c6 = arith.constant 6 : index
    %c0_37 = arith.constant 0 : index
    %c0_38 = arith.constant 0 : index
    %55 = vector.load %arg6[%c6, %c0_37, %c0_38] : memref<9x1x256xf32, #tpu.memory_space<vmem>>, vector<1x1x256xf32>
    %56 = vector.shape_cast %55 : vector<1x1x256xf32> to vector<1x256xf32>
    %57 = vector.broadcast %56 : vector<1x256xf32> to vector<8x256xf32>
    %58 = arith.mulf %54, %57 : vector<8x256xf32>
    %c6_39 = arith.constant 6 : index
    %c0_40 = arith.constant 0 : index
    %c0_41 = arith.constant 0 : index
    %59 = vector.load %arg2[%c6_39, %c0_40, %c0_41] : memref<9x8x8xf32, #tpu.memory_space<vmem>>, vector<1x8x8xf32>
    %60 = vector.shape_cast %59 : vector<1x8x8xf32> to vector<8x8xf32>
    %cst_42 = arith.constant dense<0.000000e+00> : vector<8x256xf32>
    %61 = tpu.matmul %60, %58, %cst_42 {dimension_numbers = #tpu.dot_dimension_numbers<[1], [0], [0], [1], [0, 0, 1, 1], [], []>} : vector<8x8xf32>, vector<8x256xf32>, vector<8x256xf32> -> vector<8x256xf32>
    %62 = arith.addf %53, %61 : vector<8x256xf32>
    %c240_i32 = arith.constant 240 : i32
    %63 = tpu.dynamic_rotate %1 by %c240_i32 dim 1 : vector<8x256xf32>, i32 -> vector<8x256xf32>
    %c7 = arith.constant 7 : index
    %c0_43 = arith.constant 0 : index
    %c0_44 = arith.constant 0 : index
    %64 = vector.load %arg6[%c7, %c0_43, %c0_44] : memref<9x1x256xf32, #tpu.memory_space<vmem>>, vector<1x1x256xf32>
    %65 = vector.shape_cast %64 : vector<1x1x256xf32> to vector<1x256xf32>
    %66 = vector.broadcast %65 : vector<1x256xf32> to vector<8x256xf32>
    %67 = arith.mulf %63, %66 : vector<8x256xf32>
    %c7_45 = arith.constant 7 : index
    %c0_46 = arith.constant 0 : index
    %c0_47 = arith.constant 0 : index
    %68 = vector.load %arg2[%c7_45, %c0_46, %c0_47] : memref<9x8x8xf32, #tpu.memory_space<vmem>>, vector<1x8x8xf32>
    %69 = vector.shape_cast %68 : vector<1x8x8xf32> to vector<8x8xf32>
    %cst_48 = arith.constant dense<0.000000e+00> : vector<8x256xf32>
    %70 = tpu.matmul %69, %67, %cst_48 {dimension_numbers = #tpu.dot_dimension_numbers<[1], [0], [0], [1], [0, 0, 1, 1], [], []>} : vector<8x8xf32>, vector<8x256xf32>, vector<8x256xf32> -> vector<8x256xf32>
    %71 = arith.addf %62, %70 : vector<8x256xf32>
    %c239_i32 = arith.constant 239 : i32
    %72 = tpu.dynamic_rotate %1 by %c239_i32 dim 1 : vector<8x256xf32>, i32 -> vector<8x256xf32>
    %c8 = arith.constant 8 : index
    %c0_49 = arith.constant 0 : index
    %c0_50 = arith.constant 0 : index
    %73 = vector.load %arg6[%c8, %c0_49, %c0_50] : memref<9x1x256xf32, #tpu.memory_space<vmem>>, vector<1x1x256xf32>
    %74 = vector.shape_cast %73 : vector<1x1x256xf32> to vector<1x256xf32>
    %75 = vector.broadcast %74 : vector<1x256xf32> to vector<8x256xf32>
    %76 = arith.mulf %72, %75 : vector<8x256xf32>
    %c8_51 = arith.constant 8 : index
    %c0_52 = arith.constant 0 : index
    %c0_53 = arith.constant 0 : index
    %77 = vector.load %arg2[%c8_51, %c0_52, %c0_53] : memref<9x8x8xf32, #tpu.memory_space<vmem>>, vector<1x8x8xf32>
    %78 = vector.shape_cast %77 : vector<1x8x8xf32> to vector<8x8xf32>
    %cst_54 = arith.constant dense<0.000000e+00> : vector<8x256xf32>
    %79 = tpu.matmul %78, %76, %cst_54 {dimension_numbers = #tpu.dot_dimension_numbers<[1], [0], [0], [1], [0, 0, 1, 1], [], []>} : vector<8x8xf32>, vector<8x256xf32>, vector<8x256xf32> -> vector<8x256xf32>
    %80 = arith.addf %71, %79 : vector<8x256xf32>
    %cst_55 = arith.constant 0.000000e+00 : f32
    %81 = vector.broadcast %cst_55 : f32 to vector<8x256xf32>
    %82 = arith.maximumf %80, %81 : vector<8x256xf32>
    %c0_56 = arith.constant 0 : index
    %c0_57 = arith.constant 0 : index
    %83 = vector.load %arg5[%c0_56, %c0_57] : memref<8x1xf32, #tpu.memory_space<vmem>>, vector<8x1xf32>
    %84 = vector.shape_cast %83 : vector<8x1xf32> to vector<8x1xf32>
    %85 = vector.broadcast %84 : vector<8x1xf32> to vector<8x256xf32>
    %c17_i32_58 = arith.constant 17 : i32
    %86 = tpu.dynamic_rotate %82 by %c17_i32_58 dim 1 : vector<8x256xf32>, i32 -> vector<8x256xf32>
    %c0_59 = arith.constant 0 : index
    %c0_60 = arith.constant 0 : index
    %c0_61 = arith.constant 0 : index
    %87 = vector.load %arg6[%c0_59, %c0_60, %c0_61] : memref<9x1x256xf32, #tpu.memory_space<vmem>>, vector<1x1x256xf32>
    %88 = vector.shape_cast %87 : vector<1x1x256xf32> to vector<1x256xf32>
    %89 = vector.broadcast %88 : vector<1x256xf32> to vector<8x256xf32>
    %90 = arith.mulf %86, %89 : vector<8x256xf32>
    %c0_62 = arith.constant 0 : index
    %c0_63 = arith.constant 0 : index
    %c0_64 = arith.constant 0 : index
    %91 = vector.load %arg4[%c0_62, %c0_63, %c0_64] : memref<9x8x8xf32, #tpu.memory_space<vmem>>, vector<1x8x8xf32>
    %92 = vector.shape_cast %91 : vector<1x8x8xf32> to vector<8x8xf32>
    %cst_65 = arith.constant dense<0.000000e+00> : vector<8x256xf32>
    %93 = tpu.matmul %92, %90, %cst_65 {dimension_numbers = #tpu.dot_dimension_numbers<[1], [0], [0], [1], [0, 0, 1, 1], [], []>} : vector<8x8xf32>, vector<8x256xf32>, vector<8x256xf32> -> vector<8x256xf32>
    %94 = arith.addf %85, %93 : vector<8x256xf32>
    %c16_i32_66 = arith.constant 16 : i32
    %95 = tpu.dynamic_rotate %82 by %c16_i32_66 dim 1 : vector<8x256xf32>, i32 -> vector<8x256xf32>
    %c1_67 = arith.constant 1 : index
    %c0_68 = arith.constant 0 : index
    %c0_69 = arith.constant 0 : index
    %96 = vector.load %arg6[%c1_67, %c0_68, %c0_69] : memref<9x1x256xf32, #tpu.memory_space<vmem>>, vector<1x1x256xf32>
    %97 = vector.shape_cast %96 : vector<1x1x256xf32> to vector<1x256xf32>
    %98 = vector.broadcast %97 : vector<1x256xf32> to vector<8x256xf32>
    %99 = arith.mulf %95, %98 : vector<8x256xf32>
    %c1_70 = arith.constant 1 : index
    %c0_71 = arith.constant 0 : index
    %c0_72 = arith.constant 0 : index
    %100 = vector.load %arg4[%c1_70, %c0_71, %c0_72] : memref<9x8x8xf32, #tpu.memory_space<vmem>>, vector<1x8x8xf32>
    %101 = vector.shape_cast %100 : vector<1x8x8xf32> to vector<8x8xf32>
    %cst_73 = arith.constant dense<0.000000e+00> : vector<8x256xf32>
    %102 = tpu.matmul %101, %99, %cst_73 {dimension_numbers = #tpu.dot_dimension_numbers<[1], [0], [0], [1], [0, 0, 1, 1], [], []>} : vector<8x8xf32>, vector<8x256xf32>, vector<8x256xf32> -> vector<8x256xf32>
    %103 = arith.addf %94, %102 : vector<8x256xf32>
    %c15_i32_74 = arith.constant 15 : i32
    %104 = tpu.dynamic_rotate %82 by %c15_i32_74 dim 1 : vector<8x256xf32>, i32 -> vector<8x256xf32>
    %c2_75 = arith.constant 2 : index
    %c0_76 = arith.constant 0 : index
    %c0_77 = arith.constant 0 : index
    %105 = vector.load %arg6[%c2_75, %c0_76, %c0_77] : memref<9x1x256xf32, #tpu.memory_space<vmem>>, vector<1x1x256xf32>
    %106 = vector.shape_cast %105 : vector<1x1x256xf32> to vector<1x256xf32>
    %107 = vector.broadcast %106 : vector<1x256xf32> to vector<8x256xf32>
    %108 = arith.mulf %104, %107 : vector<8x256xf32>
    %c2_78 = arith.constant 2 : index
    %c0_79 = arith.constant 0 : index
    %c0_80 = arith.constant 0 : index
    %109 = vector.load %arg4[%c2_78, %c0_79, %c0_80] : memref<9x8x8xf32, #tpu.memory_space<vmem>>, vector<1x8x8xf32>
    %110 = vector.shape_cast %109 : vector<1x8x8xf32> to vector<8x8xf32>
    %cst_81 = arith.constant dense<0.000000e+00> : vector<8x256xf32>
    %111 = tpu.matmul %110, %108, %cst_81 {dimension_numbers = #tpu.dot_dimension_numbers<[1], [0], [0], [1], [0, 0, 1, 1], [], []>} : vector<8x8xf32>, vector<8x256xf32>, vector<8x256xf32> -> vector<8x256xf32>
    %112 = arith.addf %103, %111 : vector<8x256xf32>
    %c1_i32_82 = arith.constant 1 : i32
    %113 = tpu.dynamic_rotate %82 by %c1_i32_82 dim 1 : vector<8x256xf32>, i32 -> vector<8x256xf32>
    %c3_83 = arith.constant 3 : index
    %c0_84 = arith.constant 0 : index
    %c0_85 = arith.constant 0 : index
    %114 = vector.load %arg6[%c3_83, %c0_84, %c0_85] : memref<9x1x256xf32, #tpu.memory_space<vmem>>, vector<1x1x256xf32>
    %115 = vector.shape_cast %114 : vector<1x1x256xf32> to vector<1x256xf32>
    %116 = vector.broadcast %115 : vector<1x256xf32> to vector<8x256xf32>
    %117 = arith.mulf %113, %116 : vector<8x256xf32>
    %c3_86 = arith.constant 3 : index
    %c0_87 = arith.constant 0 : index
    %c0_88 = arith.constant 0 : index
    %118 = vector.load %arg4[%c3_86, %c0_87, %c0_88] : memref<9x8x8xf32, #tpu.memory_space<vmem>>, vector<1x8x8xf32>
    %119 = vector.shape_cast %118 : vector<1x8x8xf32> to vector<8x8xf32>
    %cst_89 = arith.constant dense<0.000000e+00> : vector<8x256xf32>
    %120 = tpu.matmul %119, %117, %cst_89 {dimension_numbers = #tpu.dot_dimension_numbers<[1], [0], [0], [1], [0, 0, 1, 1], [], []>} : vector<8x8xf32>, vector<8x256xf32>, vector<8x256xf32> -> vector<8x256xf32>
    %121 = arith.addf %112, %120 : vector<8x256xf32>
    %c4_90 = arith.constant 4 : index
    %c0_91 = arith.constant 0 : index
    %c0_92 = arith.constant 0 : index
    %122 = vector.load %arg4[%c4_90, %c0_91, %c0_92] : memref<9x8x8xf32, #tpu.memory_space<vmem>>, vector<1x8x8xf32>
    %123 = vector.shape_cast %122 : vector<1x8x8xf32> to vector<8x8xf32>
    %cst_93 = arith.constant dense<0.000000e+00> : vector<8x256xf32>
    %124 = tpu.matmul %123, %82, %cst_93 {dimension_numbers = #tpu.dot_dimension_numbers<[1], [0], [0], [1], [0, 0, 1, 1], [], []>} : vector<8x8xf32>, vector<8x256xf32>, vector<8x256xf32> -> vector<8x256xf32>
    %125 = arith.addf %121, %124 : vector<8x256xf32>
    %c255_i32_94 = arith.constant 255 : i32
    %126 = tpu.dynamic_rotate %82 by %c255_i32_94 dim 1 : vector<8x256xf32>, i32 -> vector<8x256xf32>
    %c5_95 = arith.constant 5 : index
    %c0_96 = arith.constant 0 : index
    %c0_97 = arith.constant 0 : index
    %127 = vector.load %arg6[%c5_95, %c0_96, %c0_97] : memref<9x1x256xf32, #tpu.memory_space<vmem>>, vector<1x1x256xf32>
    %128 = vector.shape_cast %127 : vector<1x1x256xf32> to vector<1x256xf32>
    %129 = vector.broadcast %128 : vector<1x256xf32> to vector<8x256xf32>
    %130 = arith.mulf %126, %129 : vector<8x256xf32>
    %c5_98 = arith.constant 5 : index
    %c0_99 = arith.constant 0 : index
    %c0_100 = arith.constant 0 : index
    %131 = vector.load %arg4[%c5_98, %c0_99, %c0_100] : memref<9x8x8xf32, #tpu.memory_space<vmem>>, vector<1x8x8xf32>
    %132 = vector.shape_cast %131 : vector<1x8x8xf32> to vector<8x8xf32>
    %cst_101 = arith.constant dense<0.000000e+00> : vector<8x256xf32>
    %133 = tpu.matmul %132, %130, %cst_101 {dimension_numbers = #tpu.dot_dimension_numbers<[1], [0], [0], [1], [0, 0, 1, 1], [], []>} : vector<8x8xf32>, vector<8x256xf32>, vector<8x256xf32> -> vector<8x256xf32>
    %134 = arith.addf %125, %133 : vector<8x256xf32>
    %c241_i32_102 = arith.constant 241 : i32
    %135 = tpu.dynamic_rotate %82 by %c241_i32_102 dim 1 : vector<8x256xf32>, i32 -> vector<8x256xf32>
    %c6_103 = arith.constant 6 : index
    %c0_104 = arith.constant 0 : index
    %c0_105 = arith.constant 0 : index
    %136 = vector.load %arg6[%c6_103, %c0_104, %c0_105] : memref<9x1x256xf32, #tpu.memory_space<vmem>>, vector<1x1x256xf32>
    %137 = vector.shape_cast %136 : vector<1x1x256xf32> to vector<1x256xf32>
    %138 = vector.broadcast %137 : vector<1x256xf32> to vector<8x256xf32>
    %139 = arith.mulf %135, %138 : vector<8x256xf32>
    %c6_106 = arith.constant 6 : index
    %c0_107 = arith.constant 0 : index
    %c0_108 = arith.constant 0 : index
    %140 = vector.load %arg4[%c6_106, %c0_107, %c0_108] : memref<9x8x8xf32, #tpu.memory_space<vmem>>, vector<1x8x8xf32>
    %141 = vector.shape_cast %140 : vector<1x8x8xf32> to vector<8x8xf32>
    %cst_109 = arith.constant dense<0.000000e+00> : vector<8x256xf32>
    %142 = tpu.matmul %141, %139, %cst_109 {dimension_numbers = #tpu.dot_dimension_numbers<[1], [0], [0], [1], [0, 0, 1, 1], [], []>} : vector<8x8xf32>, vector<8x256xf32>, vector<8x256xf32> -> vector<8x256xf32>
    %143 = arith.addf %134, %142 : vector<8x256xf32>
    %c240_i32_110 = arith.constant 240 : i32
    %144 = tpu.dynamic_rotate %82 by %c240_i32_110 dim 1 : vector<8x256xf32>, i32 -> vector<8x256xf32>
    %c7_111 = arith.constant 7 : index
    %c0_112 = arith.constant 0 : index
    %c0_113 = arith.constant 0 : index
    %145 = vector.load %arg6[%c7_111, %c0_112, %c0_113] : memref<9x1x256xf32, #tpu.memory_space<vmem>>, vector<1x1x256xf32>
    %146 = vector.shape_cast %145 : vector<1x1x256xf32> to vector<1x256xf32>
    %147 = vector.broadcast %146 : vector<1x256xf32> to vector<8x256xf32>
    %148 = arith.mulf %144, %147 : vector<8x256xf32>
    %c7_114 = arith.constant 7 : index
    %c0_115 = arith.constant 0 : index
    %c0_116 = arith.constant 0 : index
    %149 = vector.load %arg4[%c7_114, %c0_115, %c0_116] : memref<9x8x8xf32, #tpu.memory_space<vmem>>, vector<1x8x8xf32>
    %150 = vector.shape_cast %149 : vector<1x8x8xf32> to vector<8x8xf32>
    %cst_117 = arith.constant dense<0.000000e+00> : vector<8x256xf32>
    %151 = tpu.matmul %150, %148, %cst_117 {dimension_numbers = #tpu.dot_dimension_numbers<[1], [0], [0], [1], [0, 0, 1, 1], [], []>} : vector<8x8xf32>, vector<8x256xf32>, vector<8x256xf32> -> vector<8x256xf32>
    %152 = arith.addf %143, %151 : vector<8x256xf32>
    %c239_i32_118 = arith.constant 239 : i32
    %153 = tpu.dynamic_rotate %82 by %c239_i32_118 dim 1 : vector<8x256xf32>, i32 -> vector<8x256xf32>
    %c8_119 = arith.constant 8 : index
    %c0_120 = arith.constant 0 : index
    %c0_121 = arith.constant 0 : index
    %154 = vector.load %arg6[%c8_119, %c0_120, %c0_121] : memref<9x1x256xf32, #tpu.memory_space<vmem>>, vector<1x1x256xf32>
    %155 = vector.shape_cast %154 : vector<1x1x256xf32> to vector<1x256xf32>
    %156 = vector.broadcast %155 : vector<1x256xf32> to vector<8x256xf32>
    %157 = arith.mulf %153, %156 : vector<8x256xf32>
    %c8_122 = arith.constant 8 : index
    %c0_123 = arith.constant 0 : index
    %c0_124 = arith.constant 0 : index
    %158 = vector.load %arg4[%c8_122, %c0_123, %c0_124] : memref<9x8x8xf32, #tpu.memory_space<vmem>>, vector<1x8x8xf32>
    %159 = vector.shape_cast %158 : vector<1x8x8xf32> to vector<8x8xf32>
    %cst_125 = arith.constant dense<0.000000e+00> : vector<8x256xf32>
    %160 = tpu.matmul %159, %157, %cst_125 {dimension_numbers = #tpu.dot_dimension_numbers<[1], [0], [0], [1], [0, 0, 1, 1], [], []>} : vector<8x8xf32>, vector<8x256xf32>, vector<8x256xf32> -> vector<8x256xf32>
    %161 = arith.addf %152, %160 : vector<8x256xf32>
    %cst_126 = arith.constant 0.000000e+00 : f32
    %162 = vector.broadcast %cst_126 : f32 to vector<8x256xf32>
    %163 = arith.maximumf %161, %162 : vector<8x256xf32>
    %164 = arith.addf %163, %1 : vector<8x256xf32>
    %c0_127 = arith.constant 0 : index
    %c0_128 = arith.constant 0 : index
    %c0_129 = arith.constant 0 : index
    %165 = vector.load %arg7[%c0_127, %c0_128, %c0_129] : memref<1x8x256xf32, #tpu.memory_space<vmem>>, vector<1x8x256xf32>
    %166 = vector.shape_cast %165 : vector<1x8x256xf32> to vector<8x256xf32>
    %167 = vector.shape_cast %164 : vector<8x256xf32> to vector<1x8x256xf32>
    tpu.vector_store %arg7[%c0_127, %c0_128, %c0_129], %167 {strides = array<i32>} : memref<1x8x256xf32, #tpu.memory_space<vmem>>, vector<1x8x256xf32>,
    return
  }
  func.func @transform_0(%arg0: i32) -> (i32, i32, i32) {
    %c0_i32 = arith.constant 0 : i32
    %c0_i32_0 = arith.constant 0 : i32
    %c0_i32_1 = arith.constant 0 : i32
    return %arg0, %c0_i32, %c0_i32_0 : i32, i32, i32
  }
  func.func @transform_1(%arg0: i32) -> (i32, i32, i32) {
    %c0_i32 = arith.constant 0 : i32
    %c0_i32_0 = arith.constant 0 : i32
    %c0_i32_1 = arith.constant 0 : i32
    %c0_i32_2 = arith.constant 0 : i32
    return %c0_i32, %c0_i32_0, %c0_i32_1 : i32, i32, i32
  }
  func.func @transform_2(%arg0: i32) -> (i32, i32) {
    %c0_i32 = arith.constant 0 : i32
    %c0_i32_0 = arith.constant 0 : i32
    %c0_i32_1 = arith.constant 0 : i32
    return %c0_i32, %c0_i32_0 : i32, i32
  }
  func.func @transform_3(%arg0: i32) -> (i32, i32, i32) {
    %c0_i32 = arith.constant 0 : i32
    %c0_i32_0 = arith.constant 0 : i32
    %c0_i32_1 = arith.constant 0 : i32
    %c0_i32_2 = arith.constant 0 : i32
    return %c0_i32, %c0_i32_0, %c0_i32_1 : i32, i32, i32
  }
  func.func @transform_4(%arg0: i32) -> (i32, i32) {
    %c0_i32 = arith.constant 0 : i32
    %c0_i32_0 = arith.constant 0 : i32
    %c0_i32_1 = arith.constant 0 : i32
    return %c0_i32, %c0_i32_0 : i32, i32
  }
  func.func @transform_5(%arg0: i32) -> (i32, i32, i32) {
    %c0_i32 = arith.constant 0 : i32
    %c0_i32_0 = arith.constant 0 : i32
    %c0_i32_1 = arith.constant 0 : i32
    %c0_i32_2 = arith.constant 0 : i32
    return %c0_i32, %c0_i32_0, %c0_i32_1 : i32, i32, i32
  }
  func.func @transform_6(%arg0: i32) -> (i32, i32, i32) {
    %c0_i32 = arith.constant 0 : i32
    %c0_i32_0 = arith.constant 0 : i32
    %c0_i32_1 = arith.constant 0 : i32
    return %arg0, %c0_i32, %c0_i32_0 : i32, i32, i32
  }
}

</mosaic_0001>

<llo_original>
// kernel: tpu_custom_call.1
$region0: #{tpu_custom_call.1}
  #allocation0 [shape = 'u32[]', space=smem, size = 0x4, offset = 0x4, fixed_abs, tag = 'smem constant byte address 0x4 - core index']
  #allocation1 [shape = 'u32[72,128]{1,0:T(1,128)}', space=vmem, size = 0x9000, scoped, tag = 'internal scratch']
  %s0 = inlined_call_operand.vmem [shape: f32[1,8,256], index: 0, kind: input, shape index: {}]
  %s1 = inlined_call_operand.vmem [shape: f32[9,8,8], index: 1, kind: input, shape index: {}]
  %s2 = inlined_call_operand.vmem [shape: f32[8,1], index: 2, kind: input, shape index: {}]
  %s3 = inlined_call_operand.vmem [shape: f32[9,8,8], index: 3, kind: input, shape index: {}]
  %s4 = inlined_call_operand.vmem [shape: f32[8,1], index: 4, kind: input, shape index: {}]
  %s5 = inlined_call_operand.vmem [shape: f32[9,1,256], index: 5, kind: input, shape index: {}]
  %s6 = inlined_call_operand.hbm [shape: f32[1,8,256], index: 6, kind: output, shape index: {}]
  %s7 = sld [smem:[#allocation0]]
  $region34: #{tpu_custom_call.1} parent=0
    _
  %s9 = ssub.s32 1, %s7
  %s10 = scalar_select 0, %s9, %s7
  $region1: #{tpu_custom_call.1} parent=0
    #allocation2 [shape = 'u8[8192]{0}', space=vmem, size = 0x2000, scoped, tag = 'output window, operand 0, single buffered']
    #allocation3 [shape = 's32[1]{0}', space=sflag, size = 0x4, scoped, tag = 'scoped memory for tpu_custom_call.1']
    %11 = vsyncpa [#allocation3], 0
    // Predicated region
    $region2: #{tpu_custom_call.1} parent=1 // pred_check
      _
    $region3: #{tpu_custom_call.1} parent=1 // pred_check_branch
      %13 = sbr.rel (0) target = $region5
    $region4: #{tpu_custom_call.1} parent=1 // pred_region
      _
    $region5: #{tpu_custom_call.1} parent=1 // pred_fallthru
      _
    // Predicated region
    $region6: #{tpu_custom_call.1} parent=1 // pred_check
      _
    $region7: #{tpu_custom_call.1} parent=1 // pred_check_branch
      %15 = sbr.rel (0) target = $region9
    $region8: #{tpu_custom_call.1} parent=1 // pred_region
      _
    $region9: #{tpu_custom_call.1} parent=1 // pred_fallthru
      _
    // Predicated region
    $region10: #{tpu_custom_call.1} parent=1 // pred_check
      _
    $region11: #{tpu_custom_call.1} parent=1 // pred_check_branch
      %17 = sbr.rel (0) target = $region13
    $region12: #{tpu_custom_call.1} parent=1 // pred_region
      _
    $region13: #{tpu_custom_call.1} parent=1 // pred_fallthru
      _
    // Predicated region
    $region14: #{tpu_custom_call.1} parent=1 // pred_check
      _
    $region15: #{tpu_custom_call.1} parent=1 // pred_check_branch
      %19 = sbr.rel (0) target = $region17
    $region16: #{tpu_custom_call.1} parent=1 // pred_region
      _
    $region17: #{tpu_custom_call.1} parent=1 // pred_fallthru
      _
    // Predicated region
    $region18: #{tpu_custom_call.1} parent=1 // pred_check
      _
    $region19: #{tpu_custom_call.1} parent=1 // pred_check_branch
      %21 = sbr.rel (0) target = $region21
    $region20: #{tpu_custom_call.1} parent=1 // pred_region
      _
    $region21: #{tpu_custom_call.1} parent=1 // pred_fallthru
      _
    // Predicated region
    $region22: #{tpu_custom_call.1} parent=1 // pred_check
      _
    $region23: #{tpu_custom_call.1} parent=1 // pred_check_branch
      %23 = sbr.rel (0) target = $region25
    $region24: #{tpu_custom_call.1} parent=1 // pred_region
      _
    $region25: #{tpu_custom_call.1} parent=1 // pred_fallthru
      _
    %v24 = vld [vmem:[%s0] sm:$0xff]
    %v25 = vld [vmem:[%s0 + $0x8] sm:$0xff]
    %v26 = vld [vmem:[%s2] sm:$0xff]
    %28 = vset.pattern.permute.xlu0 0
    %29 = vperm.xlu0 %28, %v26
    %v30 = vpop.permute.xlu0 %29
    %32 = vrot.lane.b32.xlu0 %v24, 17
    %v33 = vpop.permute.xlu0 %32
    %34 = vrot.lane.b32.xlu0 %v25, 17
    %v35 = vpop.permute.xlu0 %34
    %v36 = vlaneseq
    %v37 = vand.u32 %v36, 127
    %vm38 = vcmp.lt.s32.totalorder %v37, 17
    %v39 = vsel %vm38, %v33, %v35
    %v40 = vsel %vm38, %v35, %v33
    %v41 = vld [vmem:[%s5] sm:$0x3]
    %v43 = vperm.slane %v41, 0
    %v44 = vperm.slane %v41, 1
    %v47 = vmul.f32 %v40, %v43
    %v48 = vmul.f32 %v39, %v44
    %v49 = vld [vmem:[%s1] sm:$0xff]
    %vm50 = vcmask 64512
    %v52 = vsel %vm50, %v49, 0
    %54 = vmatpush.msra.mxu0 0.0
    %55 = vmatpush.msra.mxu0 0.0
    %56 = vmatpush.msra.mxu0 0.0
    %57 = vmatpush.msra.mxu0 0.0
    %58 = vmatpush.msra.mxu0 0.0
    %59 = vmatpush.msra.mxu0 0.0
    %60 = vmatpush.msra.mxu0 0.0
    %61 = vmatpush.msra.mxu0 0.0
    %62 = vmatpush.msra.mxu0 0.0
    %63 = vmatpush.msra.mxu0 0.0
    %64 = vmatpush.msra.mxu0 0.0
    %65 = vmatpush.msra.mxu0 0.0
    %66 = vmatpush.msra.mxu0 0.0
    %67 = vmatpush.msra.mxu0 0.0
    %68 = vmatpush.msra.mxu0 0.0
    %69 = vmatpush.msra.mxu0 %v47
    %70 = vmatmul.f32.gmra.mxu0 %v52
    %v71 = vpop.f32.mrf.mxu0
    %v72 = vadd.f32 0.0, %v71
    %73 = vdwg.mxu0
    %74 = vmatpush.msra.mxu0 0.0
    %75 = vmatpush.msra.mxu0 0.0
    %76 = vmatpush.msra.mxu0 0.0
    %77 = vmatpush.msra.mxu0 0.0
    %78 = vmatpush.msra.mxu0 0.0
    %79 = vmatpush.msra.mxu0 0.0
    %80 = vmatpush.msra.mxu0 0.0
    %81 = vmatpush.msra.mxu0 0.0
    %82 = vmatpush.msra.mxu0 0.0
    %83 = vmatpush.msra.mxu0 0.0
    %84 = vmatpush.msra.mxu0 0.0
    %85 = vmatpush.msra.mxu0 0.0
    %86 = vmatpush.msra.mxu0 0.0
    %87 = vmatpush.msra.mxu0 0.0
    %88 = vmatpush.msra.mxu0 0.0
    %89 = vmatpush.msra.mxu0 %v48
    %90 = vmatmul.f32.gmra.mxu0 %v52
    %v91 = vpop.f32.mrf.mxu0
    %v92 = vadd.f32 0.0, %v91
    %93 = vdwg.mxu0
    %v94 = vadd.f32 %v30, %v72
    %v95 = vadd.f32 %v30, %v92
    %96 = vrot.lane.b32.xlu0 %v24, 16
    %v97 = vpop.permute.xlu0 %96
    %98 = vrot.lane.b32.xlu0 %v25, 16
    %v99 = vpop.permute.xlu0 %98
    %vm100 = vcmp.lt.s32.totalorder %v37, 16
    %v101 = vsel %vm100, %v97, %v99
    %v102 = vsel %vm100, %v99, %v97
    %s103 = scalar_lea.vmem %s5, 2
    %v104 = vld [vmem:[%s103] sm:$0x3]
    %v106 = vperm.slane %v104, 0
    %v107 = vperm.slane %v104, 1
    %v110 = vmul.f32 %v102, %v106
    %v111 = vmul.f32 %v101, %v107
    %s112 = scalar_lea.vmem %s1, 8
    %v113 = vld [vmem:[%s112] sm:$0xff]
    %v115 = vsel %vm50, %v113, 0
    %117 = vmatpush.msra.mxu0 0.0
    %118 = vmatpush.msra.mxu0 0.0
    %119 = vmatpush.msra.mxu0 0.0
    %120 = vmatpush.msra.mxu0 0.0
    %121 = vmatpush.msra.mxu0 0.0
    %122 = vmatpush.msra.mxu0 0.0
    %123 = vmatpush.msra.mxu0 0.0
    %124 = vmatpush.msra.mxu0 0.0
    %125 = vmatpush.msra.mxu0 0.0
    %126 = vmatpush.msra.mxu0 0.0
    %127 = vmatpush.msra.mxu0 0.0
    %128 = vmatpush.msra.mxu0 0.0
    %129 = vmatpush.msra.mxu0 0.0
    %130 = vmatpush.msra.mxu0 0.0
    %131 = vmatpush.msra.mxu0 0.0
    %132 = vmatpush.msra.mxu0 %v110
    %133 = vmatmul.f32.gmra.mxu0 %v115
    %v134 = vpop.f32.mrf.mxu0
    %v135 = vadd.f32 0.0, %v134
    %136 = vdwg.mxu0
    %137 = vmatpush.msra.mxu0 0.0
    %138 = vmatpush.msra.mxu0 0.0
    %139 = vmatpush.msra.mxu0 0.0
    %140 = vmatpush.msra.mxu0 0.0
    %141 = vmatpush.msra.mxu0 0.0
    %142 = vmatpush.msra.mxu0 0.0
    %143 = vmatpush.msra.mxu0 0.0
    %144 = vmatpush.msra.mxu0 0.0
    %145 = vmatpush.msra.mxu0 0.0
    %146 = vmatpush.msra.mxu0 0.0
    %147 = vmatpush.msra.mxu0 0.0
    %148 = vmatpush.msra.mxu0 0.0
    %149 = vmatpush.msra.mxu0 0.0
    %150 = vmatpush.msra.mxu0 0.0
    %151 = vmatpush.msra.mxu0 0.0
    %152 = vmatpush.msra.mxu0 %v111
    %153 = vmatmul.f32.gmra.mxu0 %v115
    %v154 = vpop.f32.mrf.mxu0
    %v155 = vadd.f32 0.0, %v154
    %156 = vdwg.mxu0
    %v157 = vadd.f32 %v94, %v135
    %v158 = vadd.f32 %v95, %v155
    %159 = vrot.lane.b32.xlu0 %v24, 15
    %v160 = vpop.permute.xlu0 %159
    %161 = vrot.lane.b32.xlu0 %v25, 15
    %v162 = vpop.permute.xlu0 %161
    %vm163 = vcmp.lt.s32.totalorder %v37, 15
    %v164 = vsel %vm163, %v160, %v162
    %v165 = vsel %vm163, %v162, %v160
    %s166 = scalar_lea.vmem %s5, 4
    %v167 = vld [vmem:[%s166] sm:$0x3]
    %v169 = vperm.slane %v167, 0
    %v170 = vperm.slane %v167, 1
    %v173 = vmul.f32 %v165, %v169
    %v174 = vmul.f32 %v164, %v170
    %s175 = scalar_lea.vmem %s1, 16
    %v176 = vld [vmem:[%s175] sm:$0xff]
    %v178 = vsel %vm50, %v176, 0
    %180 = vmatpush.msra.mxu0 0.0
    %181 = vmatpush.msra.mxu0 0.0
    %182 = vmatpush.msra.mxu0 0.0
    %183 = vmatpush.msra.mxu0 0.0
    %184 = vmatpush.msra.mxu0 0.0
    %185 = vmatpush.msra.mxu0 0.0
    %186 = vmatpush.msra.mxu0 0.0
    %187 = vmatpush.msra.mxu0 0.0
    %188 = vmatpush.msra.mxu0 0.0
    %189 = vmatpush.msra.mxu0 0.0
    %190 = vmatpush.msra.mxu0 0.0
    %191 = vmatpush.msra.mxu0 0.0
    %192 = vmatpush.msra.mxu0 0.0
    %193 = vmatpush.msra.mxu0 0.0
    %194 = vmatpush.msra.mxu0 0.0
    %195 = vmatpush.msra.mxu0 %v173
    %196 = vmatmul.f32.gmra.mxu0 %v178
    %v197 = vpop.f32.mrf.mxu0
    %v198 = vadd.f32 0.0, %v197
    %199 = vdwg.mxu0
    %200 = vmatpush.msra.mxu0 0.0
    %201 = vmatpush.msra.mxu0 0.0
    %202 = vmatpush.msra.mxu0 0.0
    %203 = vmatpush.msra.mxu0 0.0
    %204 = vmatpush.msra.mxu0 0.0
    %205 = vmatpush.msra.mxu0 0.0
    %206 = vmatpush.msra.mxu0 0.0
    %207 = vmatpush.msra.mxu0 0.0
    %208 = vmatpush.msra.mxu0 0.0
    %209 = vmatpush.msra.mxu0 0.0
    %210 = vmatpush.msra.mxu0 0.0
    %211 = vmatpush.msra.mxu0 0.0
    %212 = vmatpush.msra.mxu0 0.0
    %213 = vmatpush.msra.mxu0 0.0
    %214 = vmatpush.msra.mxu0 0.0
    %215 = vmatpush.msra.mxu0 %v174
    %216 = vmatmul.f32.gmra.mxu0 %v178
    %v217 = vpop.f32.mrf.mxu0
    %v218 = vadd.f32 0.0, %v217
    %219 = vdwg.mxu0
    %v220 = vadd.f32 %v157, %v198
    %v221 = vadd.f32 %v158, %v218
    %222 = vrot.lane.b32.xlu0 %v24, 1
    %v223 = vpop.permute.xlu0 %222
    %224 = vrot.lane.b32.xlu0 %v25, 1
    %v225 = vpop.permute.xlu0 %224
    %vm226 = vcmp.lt.s32.totalorder %v37, 1
    %v227 = vsel %vm226, %v223, %v225
    %v228 = vsel %vm226, %v225, %v223
    %s229 = scalar_lea.vmem %s5, 6
    %v230 = vld [vmem:[%s229] sm:$0x3]
    %v232 = vperm.slane %v230, 0
    %v233 = vperm.slane %v230, 1
    %v236 = vmul.f32 %v228, %v232
    %v237 = vmul.f32 %v227, %v233
    %s238 = scalar_lea.vmem %s1, 24
    %v239 = vld [vmem:[%s238] sm:$0xff]
    %v241 = vsel %vm50, %v239, 0
    %243 = vmatpush.msra.mxu0 0.0
    %244 = vmatpush.msra.mxu0 0.0
    %245 = vmatpush.msra.mxu0 0.0
    %246 = vmatpush.msra.mxu0 0.0
    %247 = vmatpush.msra.mxu0 0.0
    %248 = vmatpush.msra.mxu0 0.0
    %249 = vmatpush.msra.mxu0 0.0
    %250 = vmatpush.msra.mxu0 0.0
    %251 = vmatpush.msra.mxu0 0.0
    %252 = vmatpush.msra.mxu0 0.0
    %253 = vmatpush.msra.mxu0 0.0
    %254 = vmatpush.msra.mxu0 0.0
    %255 = vmatpush.msra.mxu0 0.0
    %256 = vmatpush.msra.mxu0 0.0
    %257 = vmatpush.msra.mxu0 0.0
    %258 = vmatpush.msra.mxu0 %v236
    %259 = vmatmul.f32.gmra.mxu0 %v241
    %v260 = vpop.f32.mrf.mxu0
    %v261 = vadd.f32 0.0, %v260
    %262 = vdwg.mxu0
    %263 = vmatpush.msra.mxu0 0.0
    %264 = vmatpush.msra.mxu0 0.0
    %265 = vmatpush.msra.mxu0 0.0
    %266 = vmatpush.msra.mxu0 0.0
    %267 = vmatpush.msra.mxu0 0.0
    %268 = vmatpush.msra.mxu0 0.0
    %269 = vmatpush.msra.mxu0 0.0
    %270 = vmatpush.msra.mxu0 0.0
    %271 = vmatpush.msra.mxu0 0.0
    %272 = vmatpush.msra.mxu0 0.0
    %273 = vmatpush.msra.mxu0 0.0
    %274 = vmatpush.msra.mxu0 0.0
    %275 = vmatpush.msra.mxu0 0.0
    %276 = vmatpush.msra.mxu0 0.0
    %277 = vmatpush.msra.mxu0 0.0
    %278 = vmatpush.msra.mxu0 %v237
    %279 = vmatmul.f32.gmra.mxu0 %v241
    %v280 = vpop.f32.mrf.mxu0
    %v281 = vadd.f32 0.0, %v280
    %282 = vdwg.mxu0
    %v283 = vadd.f32 %v220, %v261
    %v284 = vadd.f32 %v221, %v281
    %s285 = scalar_lea.vmem %s1, 32
    %v286 = vld [vmem:[%s285] sm:$0xff]
    %v288 = vsel %vm50, %v286, 0
    %290 = vmatpush.msra.mxu0 0.0
    %291 = vmatpush.msra.mxu0 0.0
    %292 = vmatpush.msra.mxu0 0.0
    %293 = vmatpush.msra.mxu0 0.0
    %294 = vmatpush.msra.mxu0 0.0
    %295 = vmatpush.msra.mxu0 0.0
    %296 = vmatpush.msra.mxu0 0.0
    %297 = vmatpush.msra.mxu0 0.0
    %298 = vmatpush.msra.mxu0 0.0
    %299 = vmatpush.msra.mxu0 0.0
    %300 = vmatpush.msra.mxu0 0.0
    %301 = vmatpush.msra.mxu0 0.0
    %302 = vmatpush.msra.mxu0 0.0
    %303 = vmatpush.msra.mxu0 0.0
    %304 = vmatpush.msra.mxu0 0.0
    %305 = vmatpush.msra.mxu0 %v24
    %306 = vmatmul.f32.gmra.mxu0 %v288
    %v307 = vpop.f32.mrf.mxu0
    %v308 = vadd.f32 0.0, %v307
    %309 = vdwg.mxu0
    %310 = vmatpush.msra.mxu0 0.0
    %311 = vmatpush.msra.mxu0 0.0
    %312 = vmatpush.msra.mxu0 0.0
    %313 = vmatpush.msra.mxu0 0.0
    %314 = vmatpush.msra.mxu0 0.0
    %315 = vmatpush.msra.mxu0 0.0
    %316 = vmatpush.msra.mxu0 0.0
    %317 = vmatpush.msra.mxu0 0.0
    %318 = vmatpush.msra.mxu0 0.0
    %319 = vmatpush.msra.mxu0 0.0
    %320 = vmatpush.msra.mxu0 0.0
    %321 = vmatpush.msra.mxu0 0.0
    %322 = vmatpush.msra.mxu0 0.0
    %323 = vmatpush.msra.mxu0 0.0
    %324 = vmatpush.msra.mxu0 0.0
    %325 = vmatpush.msra.mxu0 %v25
    %326 = vmatmul.f32.gmra.mxu0 %v288
    %v327 = vpop.f32.mrf.mxu0
    %v328 = vadd.f32 0.0, %v327
    %329 = vdwg.mxu0
    %v330 = vadd.f32 %v283, %v308
    %v331 = vadd.f32 %v284, %v328
    %332 = vrot.lane.b32.xlu0 %v24, 127
    %v333 = vpop.permute.xlu0 %332
    %334 = vrot.lane.b32.xlu0 %v25, 127
    %v335 = vpop.permute.xlu0 %334
    %vm336 = vcmp.lt.s32.totalorder %v37, 127
    %v337 = vsel %vm336, %v333, %v335
    %v338 = vsel %vm336, %v335, %v333
    %s339 = scalar_lea.vmem %s5, 10
    %v340 = vld [vmem:[%s339] sm:$0x3]
    %v342 = vperm.slane %v340, 0
    %v343 = vperm.slane %v340, 1
    %v346 = vmul.f32 %v337, %v342
    %v347 = vmul.f32 %v338, %v343
    %s348 = scalar_lea.vmem %s1, 40
    %v349 = vld [vmem:[%s348] sm:$0xff]
    %v351 = vsel %vm50, %v349, 0
    %353 = vmatpush.msra.mxu0 0.0
    %354 = vmatpush.msra.mxu0 0.0
    %355 = vmatpush.msra.mxu0 0.0
    %356 = vmatpush.msra.mxu0 0.0
    %357 = vmatpush.msra.mxu0 0.0
    %358 = vmatpush.msra.mxu0 0.0
    %359 = vmatpush.msra.mxu0 0.0
    %360 = vmatpush.msra.mxu0 0.0
    %361 = vmatpush.msra.mxu0 0.0
    %362 = vmatpush.msra.mxu0 0.0
    %363 = vmatpush.msra.mxu0 0.0
    %364 = vmatpush.msra.mxu0 0.0
    %365 = vmatpush.msra.mxu0 0.0
    %366 = vmatpush.msra.mxu0 0.0
    %367 = vmatpush.msra.mxu0 0.0
    %368 = vmatpush.msra.mxu0 %v346
    %369 = vmatmul.f32.gmra.mxu0 %v351
    %v370 = vpop.f32.mrf.mxu0
    %v371 = vadd.f32 0.0, %v370
    %372 = vdwg.mxu0
    %373 = vmatpush.msra.mxu0 0.0
    %374 = vmatpush.msra.mxu0 0.0
    %375 = vmatpush.msra.mxu0 0.0
    %376 = vmatpush.msra.mxu0 0.0
    %377 = vmatpush.msra.mxu0 0.0
    %378 = vmatpush.msra.mxu0 0.0
    %379 = vmatpush.msra.mxu0 0.0
    %380 = vmatpush.msra.mxu0 0.0
    %381 = vmatpush.msra.mxu0 0.0
    %382 = vmatpush.msra.mxu0 0.0
    %383 = vmatpush.msra.mxu0 0.0
    %384 = vmatpush.msra.mxu0 0.0
    %385 = vmatpush.msra.mxu0 0.0
    %386 = vmatpush.msra.mxu0 0.0
    %387 = vmatpush.msra.mxu0 0.0
    %388 = vmatpush.msra.mxu0 %v347
    %389 = vmatmul.f32.gmra.mxu0 %v351
    %v390 = vpop.f32.mrf.mxu0
    %v391 = vadd.f32 0.0, %v390
    %392 = vdwg.mxu0
    %v393 = vadd.f32 %v330, %v371
    %v394 = vadd.f32 %v331, %v391
    %395 = vrot.lane.b32.xlu0 %v24, 113
    %v396 = vpop.permute.xlu0 %395
    %397 = vrot.lane.b32.xlu0 %v25, 113
    %v398 = vpop.permute.xlu0 %397
    %vm399 = vcmp.lt.s32.totalorder %v37, 113
    %v400 = vsel %vm399, %v396, %v398
    %v401 = vsel %vm399, %v398, %v396
    %s402 = scalar_lea.vmem %s5, 12
    %v403 = vld [vmem:[%s402] sm:$0x3]
    %v405 = vperm.slane %v403, 0
    %v406 = vperm.slane %v403, 1
    %v409 = vmul.f32 %v400, %v405
    %v410 = vmul.f32 %v401, %v406
    %s411 = scalar_lea.vmem %s1, 48
    %v412 = vld [vmem:[%s411] sm:$0xff]
    %v414 = vsel %vm50, %v412, 0
    %416 = vmatpush.msra.mxu0 0.0
    %417 = vmatpush.msra.mxu0 0.0
    %418 = vmatpush.msra.mxu0 0.0
    %419 = vmatpush.msra.mxu0 0.0
    %420 = vmatpush.msra.mxu0 0.0
    %421 = vmatpush.msra.mxu0 0.0
    %422 = vmatpush.msra.mxu0 0.0
    %423 = vmatpush.msra.mxu0 0.0
    %424 = vmatpush.msra.mxu0 0.0
    %425 = vmatpush.msra.mxu0 0.0
    %426 = vmatpush.msra.mxu0 0.0
    %427 = vmatpush.msra.mxu0 0.0
    %428 = vmatpush.msra.mxu0 0.0
    %429 = vmatpush.msra.mxu0 0.0
    %430 = vmatpush.msra.mxu0 0.0
    %431 = vmatpush.msra.mxu0 %v409
    %432 = vmatmul.f32.gmra.mxu0 %v414
    %v433 = vpop.f32.mrf.mxu0
    %v434 = vadd.f32 0.0, %v433
    %435 = vdwg.mxu0
    %436 = vmatpush.msra.mxu0 0.0
    %437 = vmatpush.msra.mxu0 0.0
    %438 = vmatpush.msra.mxu0 0.0
    %439 = vmatpush.msra.mxu0 0.0
    %440 = vmatpush.msra.mxu0 0.0
    %441 = vmatpush.msra.mxu0 0.0
    %442 = vmatpush.msra.mxu0 0.0
    %443 = vmatpush.msra.mxu0 0.0
    %444 = vmatpush.msra.mxu0 0.0
    %445 = vmatpush.msra.mxu0 0.0
    %446 = vmatpush.msra.mxu0 0.0
    %447 = vmatpush.msra.mxu0 0.0
    %448 = vmatpush.msra.mxu0 0.0
    %449 = vmatpush.msra.mxu0 0.0
    %450 = vmatpush.msra.mxu0 0.0
    %451 = vmatpush.msra.mxu0 %v410
    %452 = vmatmul.f32.gmra.mxu0 %v414
    %v453 = vpop.f32.mrf.mxu0
    %v454 = vadd.f32 0.0, %v453
    %455 = vdwg.mxu0
    %v456 = vadd.f32 %v393, %v434
    %v457 = vadd.f32 %v394, %v454
    %458 = vrot.lane.b32.xlu0 %v24, 112
    %v459 = vpop.permute.xlu0 %458
    %460 = vrot.lane.b32.xlu0 %v25, 112
    %v461 = vpop.permute.xlu0 %460
    %vm462 = vcmp.lt.s32.totalorder %v37, 112
    %v463 = vsel %vm462, %v459, %v461
    %v464 = vsel %vm462, %v461, %v459
    %s465 = scalar_lea.vmem %s5, 14
    %v466 = vld [vmem:[%s465] sm:$0x3]
    %v468 = vperm.slane %v466, 0
    %v469 = vperm.slane %v466, 1
    %v472 = vmul.f32 %v463, %v468
    %v473 = vmul.f32 %v464, %v469
    %s474 = scalar_lea.vmem %s1, 56
    %v475 = vld [vmem:[%s474] sm:$0xff]
    %v477 = vsel %vm50, %v475, 0
    %479 = vmatpush.msra.mxu0 0.0
    %480 = vmatpush.msra.mxu0 0.0
    %481 = vmatpush.msra.mxu0 0.0
    %482 = vmatpush.msra.mxu0 0.0
    %483 = vmatpush.msra.mxu0 0.0
    %484 = vmatpush.msra.mxu0 0.0
    %485 = vmatpush.msra.mxu0 0.0
    %486 = vmatpush.msra.mxu0 0.0
    %487 = vmatpush.msra.mxu0 0.0
    %488 = vmatpush.msra.mxu0 0.0
    %489 = vmatpush.msra.mxu0 0.0
    %490 = vmatpush.msra.mxu0 0.0
    %491 = vmatpush.msra.mxu0 0.0
    %492 = vmatpush.msra.mxu0 0.0
    %493 = vmatpush.msra.mxu0 0.0
    %494 = vmatpush.msra.mxu0 %v472
    %495 = vmatmul.f32.gmra.mxu0 %v477
    %v496 = vpop.f32.mrf.mxu0
    %v497 = vadd.f32 0.0, %v496
    %498 = vdwg.mxu0
    %499 = vmatpush.msra.mxu0 0.0
    %500 = vmatpush.msra.mxu0 0.0
    %501 = vmatpush.msra.mxu0 0.0
    %502 = vmatpush.msra.mxu0 0.0
    %503 = vmatpush.msra.mxu0 0.0
    %504 = vmatpush.msra.mxu0 0.0
    %505 = vmatpush.msra.mxu0 0.0
    %506 = vmatpush.msra.mxu0 0.0
    %507 = vmatpush.msra.mxu0 0.0
    %508 = vmatpush.msra.mxu0 0.0
    %509 = vmatpush.msra.mxu0 0.0
    %510 = vmatpush.msra.mxu0 0.0
    %511 = vmatpush.msra.mxu0 0.0
    %512 = vmatpush.msra.mxu0 0.0
    %513 = vmatpush.msra.mxu0 0.0
    %514 = vmatpush.msra.mxu0 %v473
    %515 = vmatmul.f32.gmra.mxu0 %v477
    %v516 = vpop.f32.mrf.mxu0
    %v517 = vadd.f32 0.0, %v516
    %518 = vdwg.mxu0
    %v519 = vadd.f32 %v456, %v497
    %v520 = vadd.f32 %v457, %v517
    %521 = vrot.lane.b32.xlu0 %v24, 111
    %v522 = vpop.permute.xlu0 %521
    %523 = vrot.lane.b32.xlu0 %v25, 111
    %v524 = vpop.permute.xlu0 %523
    %vm525 = vcmp.lt.s32.totalorder %v37, 111
    %v526 = vsel %vm525, %v522, %v524
    %v527 = vsel %vm525, %v524, %v522
    %s528 = scalar_lea.vmem %s5, 16
    %v529 = vld [vmem:[%s528] sm:$0x3]
    %v531 = vperm.slane %v529, 0
    %v532 = vperm.slane %v529, 1
    %v535 = vmul.f32 %v526, %v531
    %v536 = vmul.f32 %v527, %v532
    %s537 = scalar_lea.vmem %s1, 64
    %v538 = vld [vmem:[%s537] sm:$0xff]
    %v540 = vsel %vm50, %v538, 0
    %542 = vmatpush.msra.mxu0 0.0
    %543 = vmatpush.msra.mxu0 0.0
    %544 = vmatpush.msra.mxu0 0.0
    %545 = vmatpush.msra.mxu0 0.0
    %546 = vmatpush.msra.mxu0 0.0
    %547 = vmatpush.msra.mxu0 0.0
    %548 = vmatpush.msra.mxu0 0.0
    %549 = vmatpush.msra.mxu0 0.0
    %550 = vmatpush.msra.mxu0 0.0
    %551 = vmatpush.msra.mxu0 0.0
    %552 = vmatpush.msra.mxu0 0.0
    %553 = vmatpush.msra.mxu0 0.0
    %554 = vmatpush.msra.mxu0 0.0
    %555 = vmatpush.msra.mxu0 0.0
    %556 = vmatpush.msra.mxu0 0.0
    %557 = vmatpush.msra.mxu0 %v535
    %558 = vmatmul.f32.gmra.mxu0 %v540
    %v559 = vpop.f32.mrf.mxu0
    %v560 = vadd.f32 0.0, %v559
    %561 = vdwg.mxu0
    %562 = vmatpush.msra.mxu0 0.0
    %563 = vmatpush.msra.mxu0 0.0
    %564 = vmatpush.msra.mxu0 0.0
    %565 = vmatpush.msra.mxu0 0.0
    %566 = vmatpush.msra.mxu0 0.0
    %567 = vmatpush.msra.mxu0 0.0
    %568 = vmatpush.msra.mxu0 0.0
    %569 = vmatpush.msra.mxu0 0.0
    %570 = vmatpush.msra.mxu0 0.0
    %571 = vmatpush.msra.mxu0 0.0
    %572 = vmatpush.msra.mxu0 0.0
    %573 = vmatpush.msra.mxu0 0.0
    %574 = vmatpush.msra.mxu0 0.0
    %575 = vmatpush.msra.mxu0 0.0
    %576 = vmatpush.msra.mxu0 0.0
    %577 = vmatpush.msra.mxu0 %v536
    %578 = vmatmul.f32.gmra.mxu0 %v540
    %v579 = vpop.f32.mrf.mxu0
    %v580 = vadd.f32 0.0, %v579
    %581 = vdwg.mxu0
    %v582 = vadd.f32 %v519, %v560
    %v583 = vadd.f32 %v520, %v580
    %v584 = vmax.f32 %v582, 0.0
    %v585 = vmax.f32 %v583, 0.0
    %v586 = vld [vmem:[%s4] sm:$0xff]
    %588 = vset.pattern.permute.xlu0 0
    %589 = vperm.xlu0 %588, %v586
    %v590 = vpop.permute.xlu0 %589
    %592 = vrot.lane.b32.xlu0 %v584, 17
    %v593 = vpop.permute.xlu0 %592
    %594 = vrot.lane.b32.xlu0 %v585, 17
    %v595 = vpop.permute.xlu0 %594
    %v596 = vsel %vm38, %v593, %v595
    %v597 = vsel %vm38, %v595, %v593
    %v598 = vmul.f32 %v597, %v43
    %v599 = vmul.f32 %v596, %v44
    %v600 = vld [vmem:[%s3] sm:$0xff]
    %v602 = vsel %vm50, %v600, 0
    %604 = vmatpush.msra.mxu0 0.0
    %605 = vmatpush.msra.mxu0 0.0
    %606 = vmatpush.msra.mxu0 0.0
    %607 = vmatpush.msra.mxu0 0.0
    %608 = vmatpush.msra.mxu0 0.0
    %609 = vmatpush.msra.mxu0 0.0
    %610 = vmatpush.msra.mxu0 0.0
    %611 = vmatpush.msra.mxu0 0.0
    %612 = vmatpush.msra.mxu0 0.0
    %613 = vmatpush.msra.mxu0 0.0
    %614 = vmatpush.msra.mxu0 0.0
    %615 = vmatpush.msra.mxu0 0.0
    %616 = vmatpush.msra.mxu0 0.0
    %617 = vmatpush.msra.mxu0 0.0
    %618 = vmatpush.msra.mxu0 0.0
    %619 = vmatpush.msra.mxu0 %v598
    %620 = vmatmul.f32.gmra.mxu0 %v602
    %v621 = vpop.f32.mrf.mxu0
    %v622 = vadd.f32 0.0, %v621
    %623 = vdwg.mxu0
    %624 = vmatpush.msra.mxu0 0.0
    %625 = vmatpush.msra.mxu0 0.0
    %626 = vmatpush.msra.mxu0 0.0
    %627 = vmatpush.msra.mxu0 0.0
    %628 = vmatpush.msra.mxu0 0.0
    %629 = vmatpush.msra.mxu0 0.0
    %630 = vmatpush.msra.mxu0 0.0
    %631 = vmatpush.msra.mxu0 0.0
    %632 = vmatpush.msra.mxu0 0.0
    %633 = vmatpush.msra.mxu0 0.0
    %634 = vmatpush.msra.mxu0 0.0
    %635 = vmatpush.msra.mxu0 0.0
    %636 = vmatpush.msra.mxu0 0.0
    %637 = vmatpush.msra.mxu0 0.0
    %638 = vmatpush.msra.mxu0 0.0
    %639 = vmatpush.msra.mxu0 %v599
    %640 = vmatmul.f32.gmra.mxu0 %v602
    %v641 = vpop.f32.mrf.mxu0
    %v642 = vadd.f32 0.0, %v641
    %643 = vdwg.mxu0
    %v644 = vadd.f32 %v590, %v622
    %v645 = vadd.f32 %v590, %v642
    %646 = vrot.lane.b32.xlu0 %v584, 16
    %v647 = vpop.permute.xlu0 %646
    %648 = vrot.lane.b32.xlu0 %v585, 16
    %v649 = vpop.permute.xlu0 %648
    %v650 = vsel %vm100, %v647, %v649
    %v651 = vsel %vm100, %v649, %v647
    %v652 = vmul.f32 %v651, %v106
    %v653 = vmul.f32 %v650, %v107
    %s654 = scalar_lea.vmem %s3, 8
    %v655 = vld [vmem:[%s654] sm:$0xff]
    %v657 = vsel %vm50, %v655, 0
    %659 = vmatpush.msra.mxu0 0.0
    %660 = vmatpush.msra.mxu0 0.0
    %661 = vmatpush.msra.mxu0 0.0
    %662 = vmatpush.msra.mxu0 0.0
    %663 = vmatpush.msra.mxu0 0.0
    %664 = vmatpush.msra.mxu0 0.0
    %665 = vmatpush.msra.mxu0 0.0
    %666 = vmatpush.msra.mxu0 0.0
    %667 = vmatpush.msra.mxu0 0.0
    %668 = vmatpush.msra.mxu0 0.0
    %669 = vmatpush.msra.mxu0 0.0
    %670 = vmatpush.msra.mxu0 0.0
    %671 = vmatpush.msra.mxu0 0.0
    %672 = vmatpush.msra.mxu0 0.0
    %673 = vmatpush.msra.mxu0 0.0
    %674 = vmatpush.msra.mxu0 %v652
    %675 = vmatmul.f32.gmra.mxu0 %v657
    %v676 = vpop.f32.mrf.mxu0
    %v677 = vadd.f32 0.0, %v676
    %678 = vdwg.mxu0
    %679 = vmatpush.msra.mxu0 0.0
    %680 = vmatpush.msra.mxu0 0.0
    %681 = vmatpush.msra.mxu0 0.0
    %682 = vmatpush.msra.mxu0 0.0
    %683 = vmatpush.msra.mxu0 0.0
    %684 = vmatpush.msra.mxu0 0.0
    %685 = vmatpush.msra.mxu0 0.0
    %686 = vmatpush.msra.mxu0 0.0
    %687 = vmatpush.msra.mxu0 0.0
    %688 = vmatpush.msra.mxu0 0.0
    %689 = vmatpush.msra.mxu0 0.0
    %690 = vmatpush.msra.mxu0 0.0
    %691 = vmatpush.msra.mxu0 0.0
    %692 = vmatpush.msra.mxu0 0.0
    %693 = vmatpush.msra.mxu0 0.0
    %694 = vmatpush.msra.mxu0 %v653
    %695 = vmatmul.f32.gmra.mxu0 %v657
    %v696 = vpop.f32.mrf.mxu0
    %v697 = vadd.f32 0.0, %v696
    %698 = vdwg.mxu0
    %v699 = vadd.f32 %v644, %v677
    %v700 = vadd.f32 %v645, %v697
    %701 = vrot.lane.b32.xlu0 %v584, 15
    %v702 = vpop.permute.xlu0 %701
    %703 = vrot.lane.b32.xlu0 %v585, 15
    %v704 = vpop.permute.xlu0 %703
    %v705 = vsel %vm163, %v702, %v704
    %v706 = vsel %vm163, %v704, %v702
    %v707 = vmul.f32 %v706, %v169
    %v708 = vmul.f32 %v705, %v170
    %s709 = scalar_lea.vmem %s3, 16
    %v710 = vld [vmem:[%s709] sm:$0xff]
    %v712 = vsel %vm50, %v710, 0
    %714 = vmatpush.msra.mxu0 0.0
    %715 = vmatpush.msra.mxu0 0.0
    %716 = vmatpush.msra.mxu0 0.0
    %717 = vmatpush.msra.mxu0 0.0
    %718 = vmatpush.msra.mxu0 0.0
    %719 = vmatpush.msra.mxu0 0.0
    %720 = vmatpush.msra.mxu0 0.0
    %721 = vmatpush.msra.mxu0 0.0
    %722 = vmatpush.msra.mxu0 0.0
    %723 = vmatpush.msra.mxu0 0.0
    %724 = vmatpush.msra.mxu0 0.0
    %725 = vmatpush.msra.mxu0 0.0
    %726 = vmatpush.msra.mxu0 0.0
    %727 = vmatpush.msra.mxu0 0.0
    %728 = vmatpush.msra.mxu0 0.0
    %729 = vmatpush.msra.mxu0 %v707
    %730 = vmatmul.f32.gmra.mxu0 %v712
    %v731 = vpop.f32.mrf.mxu0
    %v732 = vadd.f32 0.0, %v731
    %733 = vdwg.mxu0
    %734 = vmatpush.msra.mxu0 0.0
    %735 = vmatpush.msra.mxu0 0.0
    %736 = vmatpush.msra.mxu0 0.0
    %737 = vmatpush.msra.mxu0 0.0
    %738 = vmatpush.msra.mxu0 0.0
    %739 = vmatpush.msra.mxu0 0.0
    %740 = vmatpush.msra.mxu0 0.0
    %741 = vmatpush.msra.mxu0 0.0
    %742 = vmatpush.msra.mxu0 0.0
    %743 = vmatpush.msra.mxu0 0.0
    %744 = vmatpush.msra.mxu0 0.0
    %745 = vmatpush.msra.mxu0 0.0
    %746 = vmatpush.msra.mxu0 0.0
    %747 = vmatpush.msra.mxu0 0.0
    %748 = vmatpush.msra.mxu0 0.0
    %749 = vmatpush.msra.mxu0 %v708
    %750 = vmatmul.f32.gmra.mxu0 %v712
    %v751 = vpop.f32.mrf.mxu0
    %v752 = vadd.f32 0.0, %v751
    %753 = vdwg.mxu0
    %v754 = vadd.f32 %v699, %v732
    %v755 = vadd.f32 %v700, %v752
    %756 = vrot.lane.b32.xlu0 %v584, 1
    %v757 = vpop.permute.xlu0 %756
    %758 = vrot.lane.b32.xlu0 %v585, 1
    %v759 = vpop.permute.xlu0 %758
    %v760 = vsel %vm226, %v757, %v759
    %v761 = vsel %vm226, %v759, %v757
    %v762 = vmul.f32 %v761, %v232
    %v763 = vmul.f32 %v760, %v233
    %s764 = scalar_lea.vmem %s3, 24
    %v765 = vld [vmem:[%s764] sm:$0xff]
    %v767 = vsel %vm50, %v765, 0
    %769 = vmatpush.msra.mxu0 0.0
    %770 = vmatpush.msra.mxu0 0.0
    %771 = vmatpush.msra.mxu0 0.0
    %772 = vmatpush.msra.mxu0 0.0
    %773 = vmatpush.msra.mxu0 0.0
    %774 = vmatpush.msra.mxu0 0.0
    %775 = vmatpush.msra.mxu0 0.0
    %776 = vmatpush.msra.mxu0 0.0
    %777 = vmatpush.msra.mxu0 0.0
    %778 = vmatpush.msra.mxu0 0.0
    %779 = vmatpush.msra.mxu0 0.0
    %780 = vmatpush.msra.mxu0 0.0
    %781 = vmatpush.msra.mxu0 0.0
    %782 = vmatpush.msra.mxu0 0.0
    %783 = vmatpush.msra.mxu0 0.0
    %784 = vmatpush.msra.mxu0 %v762
    %785 = vmatmul.f32.gmra.mxu0 %v767
    %v786 = vpop.f32.mrf.mxu0
    %v787 = vadd.f32 0.0, %v786
    %788 = vdwg.mxu0
    %789 = vmatpush.msra.mxu0 0.0
    %790 = vmatpush.msra.mxu0 0.0
    %791 = vmatpush.msra.mxu0 0.0
    %792 = vmatpush.msra.mxu0 0.0
    %793 = vmatpush.msra.mxu0 0.0
    %794 = vmatpush.msra.mxu0 0.0
    %795 = vmatpush.msra.mxu0 0.0
    %796 = vmatpush.msra.mxu0 0.0
    %797 = vmatpush.msra.mxu0 0.0
    %798 = vmatpush.msra.mxu0 0.0
    %799 = vmatpush.msra.mxu0 0.0
    %800 = vmatpush.msra.mxu0 0.0
    %801 = vmatpush.msra.mxu0 0.0
    %802 = vmatpush.msra.mxu0 0.0
    %803 = vmatpush.msra.mxu0 0.0
    %804 = vmatpush.msra.mxu0 %v763
    %805 = vmatmul.f32.gmra.mxu0 %v767
    %v806 = vpop.f32.mrf.mxu0
    %v807 = vadd.f32 0.0, %v806
    %808 = vdwg.mxu0
    %v809 = vadd.f32 %v754, %v787
    %v810 = vadd.f32 %v755, %v807
    %s811 = scalar_lea.vmem %s3, 32
    %v812 = vld [vmem:[%s811] sm:$0xff]
    %v814 = vsel %vm50, %v812, 0
    %816 = vmatpush.msra.mxu0 0.0
    %817 = vmatpush.msra.mxu0 0.0
    %818 = vmatpush.msra.mxu0 0.0
    %819 = vmatpush.msra.mxu0 0.0
    %820 = vmatpush.msra.mxu0 0.0
    %821 = vmatpush.msra.mxu0 0.0
    %822 = vmatpush.msra.mxu0 0.0
    %823 = vmatpush.msra.mxu0 0.0
    %824 = vmatpush.msra.mxu0 0.0
    %825 = vmatpush.msra.mxu0 0.0
    %826 = vmatpush.msra.mxu0 0.0
    %827 = vmatpush.msra.mxu0 0.0
    %828 = vmatpush.msra.mxu0 0.0
    %829 = vmatpush.msra.mxu0 0.0
    %830 = vmatpush.msra.mxu0 0.0
    %831 = vmatpush.msra.mxu0 %v584
    %832 = vmatmul.f32.gmra.mxu0 %v814
    %v833 = vpop.f32.mrf.mxu0
    %v834 = vadd.f32 0.0, %v833
    %835 = vdwg.mxu0
    %836 = vmatpush.msra.mxu0 0.0
    %837 = vmatpush.msra.mxu0 0.0
    %838 = vmatpush.msra.mxu0 0.0
    %839 = vmatpush.msra.mxu0 0.0
    %840 = vmatpush.msra.mxu0 0.0
    %841 = vmatpush.msra.mxu0 0.0
    %842 = vmatpush.msra.mxu0 0.0
    %843 = vmatpush.msra.mxu0 0.0
    %844 = vmatpush.msra.mxu0 0.0
    %845 = vmatpush.msra.mxu0 0.0
    %846 = vmatpush.msra.mxu0 0.0
    %847 = vmatpush.msra.mxu0 0.0
    %848 = vmatpush.msra.mxu0 0.0
    %849 = vmatpush.msra.mxu0 0.0
    %850 = vmatpush.msra.mxu0 0.0
    %851 = vmatpush.msra.mxu0 %v585
    %852 = vmatmul.f32.gmra.mxu0 %v814
    %v853 = vpop.f32.mrf.mxu0
    %v854 = vadd.f32 0.0, %v853
    %855 = vdwg.mxu0
    %v856 = vadd.f32 %v809, %v834
    %v857 = vadd.f32 %v810, %v854
    %858 = vrot.lane.b32.xlu0 %v584, 127
    %v859 = vpop.permute.xlu0 %858
    %860 = vrot.lane.b32.xlu0 %v585, 127
    %v861 = vpop.permute.xlu0 %860
    %v862 = vsel %vm336, %v859, %v861
    %v863 = vsel %vm336, %v861, %v859
    %v864 = vmul.f32 %v862, %v342
    %v865 = vmul.f32 %v863, %v343
    %s866 = scalar_lea.vmem %s3, 40
    %v867 = vld [vmem:[%s866] sm:$0xff]
    %v869 = vsel %vm50, %v867, 0
    %871 = vmatpush.msra.mxu0 0.0
    %872 = vmatpush.msra.mxu0 0.0
    %873 = vmatpush.msra.mxu0 0.0
    %874 = vmatpush.msra.mxu0 0.0
    %875 = vmatpush.msra.mxu0 0.0
    %876 = vmatpush.msra.mxu0 0.0
    %877 = vmatpush.msra.mxu0 0.0
    %878 = vmatpush.msra.mxu0 0.0
    %879 = vmatpush.msra.mxu0 0.0
    %880 = vmatpush.msra.mxu0 0.0
    %881 = vmatpush.msra.mxu0 0.0
    %882 = vmatpush.msra.mxu0 0.0
    %883 = vmatpush.msra.mxu0 0.0
    %884 = vmatpush.msra.mxu0 0.0
    %885 = vmatpush.msra.mxu0 0.0
    %886 = vmatpush.msra.mxu0 %v864
    %887 = vmatmul.f32.gmra.mxu0 %v869
    %v888 = vpop.f32.mrf.mxu0
    %v889 = vadd.f32 0.0, %v888
    %890 = vdwg.mxu0
    %891 = vmatpush.msra.mxu0 0.0
    %892 = vmatpush.msra.mxu0 0.0
    %893 = vmatpush.msra.mxu0 0.0
    %894 = vmatpush.msra.mxu0 0.0
    %895 = vmatpush.msra.mxu0 0.0
    %896 = vmatpush.msra.mxu0 0.0
    %897 = vmatpush.msra.mxu0 0.0
    %898 = vmatpush.msra.mxu0 0.0
    %899 = vmatpush.msra.mxu0 0.0
    %900 = vmatpush.msra.mxu0 0.0
    %901 = vmatpush.msra.mxu0 0.0
    %902 = vmatpush.msra.mxu0 0.0
    %903 = vmatpush.msra.mxu0 0.0
    %904 = vmatpush.msra.mxu0 0.0
    %905 = vmatpush.msra.mxu0 0.0
    %906 = vmatpush.msra.mxu0 %v865
    %907 = vmatmul.f32.gmra.mxu0 %v869
    %v908 = vpop.f32.mrf.mxu0
    %v909 = vadd.f32 0.0, %v908
    %910 = vdwg.mxu0
    %v911 = vadd.f32 %v856, %v889
    %v912 = vadd.f32 %v857, %v909
    %913 = vrot.lane.b32.xlu0 %v584, 113
    %v914 = vpop.permute.xlu0 %913
    %915 = vrot.lane.b32.xlu0 %v585, 113
    %v916 = vpop.permute.xlu0 %915
    %v917 = vsel %vm399, %v914, %v916
    %v918 = vsel %vm399, %v916, %v914
    %v919 = vmul.f32 %v917, %v405
    %v920 = vmul.f32 %v918, %v406
    %s921 = scalar_lea.vmem %s3, 48
    %v922 = vld [vmem:[%s921] sm:$0xff]
    %v924 = vsel %vm50, %v922, 0
    %926 = vmatpush.msra.mxu0 0.0
    %927 = vmatpush.msra.mxu0 0.0
    %928 = vmatpush.msra.mxu0 0.0
    %929 = vmatpush.msra.mxu0 0.0
    %930 = vmatpush.msra.mxu0 0.0
    %931 = vmatpush.msra.mxu0 0.0
    %932 = vmatpush.msra.mxu0 0.0
    %933 = vmatpush.msra.mxu0 0.0
    %934 = vmatpush.msra.mxu0 0.0
    %935 = vmatpush.msra.mxu0 0.0
    %936 = vmatpush.msra.mxu0 0.0
    %937 = vmatpush.msra.mxu0 0.0
    %938 = vmatpush.msra.mxu0 0.0
    %939 = vmatpush.msra.mxu0 0.0
    %940 = vmatpush.msra.mxu0 0.0
    %941 = vmatpush.msra.mxu0 %v919
    %942 = vmatmul.f32.gmra.mxu0 %v924
    %v943 = vpop.f32.mrf.mxu0
    %v944 = vadd.f32 0.0, %v943
    %945 = vdwg.mxu0
    %946 = vmatpush.msra.mxu0 0.0
    %947 = vmatpush.msra.mxu0 0.0
    %948 = vmatpush.msra.mxu0 0.0
    %949 = vmatpush.msra.mxu0 0.0
    %950 = vmatpush.msra.mxu0 0.0
    %951 = vmatpush.msra.mxu0 0.0
    %952 = vmatpush.msra.mxu0 0.0
    %953 = vmatpush.msra.mxu0 0.0
    %954 = vmatpush.msra.mxu0 0.0
    %955 = vmatpush.msra.mxu0 0.0
    %956 = vmatpush.msra.mxu0 0.0
    %957 = vmatpush.msra.mxu0 0.0
    %958 = vmatpush.msra.mxu0 0.0
    %959 = vmatpush.msra.mxu0 0.0
    %960 = vmatpush.msra.mxu0 0.0
    %961 = vmatpush.msra.mxu0 %v920
    %962 = vmatmul.f32.gmra.mxu0 %v924
    %v963 = vpop.f32.mrf.mxu0
    %v964 = vadd.f32 0.0, %v963
    %965 = vdwg.mxu0
    %v966 = vadd.f32 %v911, %v944
    %v967 = vadd.f32 %v912, %v964
    %968 = vrot.lane.b32.xlu0 %v584, 112
    %v969 = vpop.permute.xlu0 %968
    %970 = vrot.lane.b32.xlu0 %v585, 112
    %v971 = vpop.permute.xlu0 %970
    %v972 = vsel %vm462, %v969, %v971
    %v973 = vsel %vm462, %v971, %v969
    %v974 = vmul.f32 %v972, %v468
    %v975 = vmul.f32 %v973, %v469
    %s976 = scalar_lea.vmem %s3, 56
    %v977 = vld [vmem:[%s976] sm:$0xff]
    %v979 = vsel %vm50, %v977, 0
    %981 = vmatpush.msra.mxu0 0.0
    %982 = vmatpush.msra.mxu0 0.0
    %983 = vmatpush.msra.mxu0 0.0
    %984 = vmatpush.msra.mxu0 0.0
    %985 = vmatpush.msra.mxu0 0.0
    %986 = vmatpush.msra.mxu0 0.0
    %987 = vmatpush.msra.mxu0 0.0
    %988 = vmatpush.msra.mxu0 0.0
    %989 = vmatpush.msra.mxu0 0.0
    %990 = vmatpush.msra.mxu0 0.0
    %991 = vmatpush.msra.mxu0 0.0
    %992 = vmatpush.msra.mxu0 0.0
    %993 = vmatpush.msra.mxu0 0.0
    %994 = vmatpush.msra.mxu0 0.0
    %995 = vmatpush.msra.mxu0 0.0
    %996 = vmatpush.msra.mxu0 %v974
    %997 = vmatmul.f32.gmra.mxu0 %v979
    %v998 = vpop.f32.mrf.mxu0
    %v999 = vadd.f32 0.0, %v998
    %1000 = vdwg.mxu0
    %1001 = vmatpush.msra.mxu0 0.0
    %1002 = vmatpush.msra.mxu0 0.0
    %1003 = vmatpush.msra.mxu0 0.0
    %1004 = vmatpush.msra.mxu0 0.0
    %1005 = vmatpush.msra.mxu0 0.0
    %1006 = vmatpush.msra.mxu0 0.0
    %1007 = vmatpush.msra.mxu0 0.0
    %1008 = vmatpush.msra.mxu0 0.0
    %1009 = vmatpush.msra.mxu0 0.0
    %1010 = vmatpush.msra.mxu0 0.0
    %1011 = vmatpush.msra.mxu0 0.0
    %1012 = vmatpush.msra.mxu0 0.0
    %1013 = vmatpush.msra.mxu0 0.0
    %1014 = vmatpush.msra.mxu0 0.0
    %1015 = vmatpush.msra.mxu0 0.0
    %1016 = vmatpush.msra.mxu0 %v975
    %1017 = vmatmul.f32.gmra.mxu0 %v979
    %v1018 = vpop.f32.mrf.mxu0
    %v1019 = vadd.f32 0.0, %v1018
    %1020 = vdwg.mxu0
    %v1021 = vadd.f32 %v966, %v999
    %v1022 = vadd.f32 %v967, %v1019
    %1023 = vrot.lane.b32.xlu0 %v584, 111
    %v1024 = vpop.permute.xlu0 %1023
    %1025 = vrot.lane.b32.xlu0 %v585, 111
    %v1026 = vpop.permute.xlu0 %1025
    %v1027 = vsel %vm525, %v1024, %v1026
    %v1028 = vsel %vm525, %v1026, %v1024
    %v1029 = vmul.f32 %v1027, %v531
    %v1030 = vmul.f32 %v1028, %v532
    %s1031 = scalar_lea.vmem %s3, 64
    %v1032 = vld [vmem:[%s1031] sm:$0xff]
    %v1034 = vsel %vm50, %v1032, 0
    %1036 = vmatpush.msra.mxu0 0.0
    %1037 = vmatpush.msra.mxu0 0.0
    %1038 = vmatpush.msra.mxu0 0.0
    %1039 = vmatpush.msra.mxu0 0.0
    %1040 = vmatpush.msra.mxu0 0.0
    %1041 = vmatpush.msra.mxu0 0.0
    %1042 = vmatpush.msra.mxu0 0.0
    %1043 = vmatpush.msra.mxu0 0.0
    %1044 = vmatpush.msra.mxu0 0.0
    %1045 = vmatpush.msra.mxu0 0.0
    %1046 = vmatpush.msra.mxu0 0.0
    %1047 = vmatpush.msra.mxu0 0.0
    %1048 = vmatpush.msra.mxu0 0.0
    %1049 = vmatpush.msra.mxu0 0.0
    %1050 = vmatpush.msra.mxu0 0.0
    %1051 = vmatpush.msra.mxu0 %v1029
    %1052 = vmatmul.f32.gmra.mxu0 %v1034
    %v1053 = vpop.f32.mrf.mxu0
    %v1054 = vadd.f32 0.0, %v1053
    %1055 = vdwg.mxu0
    %1056 = vmatpush.msra.mxu0 0.0
    %1057 = vmatpush.msra.mxu0 0.0
    %1058 = vmatpush.msra.mxu0 0.0
    %1059 = vmatpush.msra.mxu0 0.0
    %1060 = vmatpush.msra.mxu0 0.0
    %1061 = vmatpush.msra.mxu0 0.0
    %1062 = vmatpush.msra.mxu0 0.0
    %1063 = vmatpush.msra.mxu0 0.0
    %1064 = vmatpush.msra.mxu0 0.0
    %1065 = vmatpush.msra.mxu0 0.0
    %1066 = vmatpush.msra.mxu0 0.0
    %1067 = vmatpush.msra.mxu0 0.0
    %1068 = vmatpush.msra.mxu0 0.0
    %1069 = vmatpush.msra.mxu0 0.0
    %1070 = vmatpush.msra.mxu0 0.0
    %1071 = vmatpush.msra.mxu0 %v1030
    %1072 = vmatmul.f32.gmra.mxu0 %v1034
    %v1073 = vpop.f32.mrf.mxu0
    %v1074 = vadd.f32 0.0, %v1073
    %1075 = vdwg.mxu0
    %v1076 = vadd.f32 %v1021, %v1054
    %v1077 = vadd.f32 %v1022, %v1074
    %v1078 = vmax.f32 %v1076, 0.0
    %v1079 = vmax.f32 %v1077, 0.0
    %v1080 = vadd.f32 %v1078, %v24
    %v1081 = vadd.f32 %v1079, %v25
    %1082 = vst [vmem:[#allocation2] sm:$0xff] %v1080
    %1083 = vst [vmem:[#allocation2 + $0x8] sm:$0xff] %v1081
    // Predicated region
    $region26: #{tpu_custom_call.1} parent=1 // pred_check
      _
    $region27: #{tpu_custom_call.1} parent=1 // pred_check_branch
      %1085 = sbr.rel (0) target = $region29
    $region28: #{tpu_custom_call.1} parent=1 // pred_region
      %1087 = vsyncadd [#allocation3], 0
      %s1089 = sshll.u32 [#allocation2], 4
      %s1090 = int_to_ptr.vmem [resolvable:$true] %s1089
      %s1091 = sshll.u32 %s6, 4
      %s1092 = int_to_ptr.hbm [resolvable:$true] %s1091
      %1094 = dma.vmem_to_hbm [thread:$0]  %s1090, 256, %s1092, [#allocation3]
    $region29: #{tpu_custom_call.1} parent=1 // pred_fallthru
      _
    // Predicated region
    $region30: #{tpu_custom_call.1} parent=1 // pred_check
      _
    $region31: #{tpu_custom_call.1} parent=1 // pred_check_branch
      %1096 = sbr.rel (0) target = $region33
    $region32: #{tpu_custom_call.1} parent=1 // pred_region
      %1098 = dma.done [#allocation3], 256
    $region33: #{tpu_custom_call.1} parent=1 // pred_fallthru
      _
    %1099 = vsyncpa [#allocation3], 1

</llo_original>
